<compile_context>
chip_gen: v5e
topology: v5e:2x2
jax: 0.10.0
libtpu: 0.0.40
codegen_flags: <defaults>
</compile_context>

<pallas_src>
import functools

import jax
import jax.numpy as jnp
from jax.experimental import pallas as pl
from jax.experimental.pallas import tpu as pltpu


# Tap offsets of a 3x3 kernel, row-major in (dy, dx); t = dy*3 + dx.
_TAP_OFFSETS = tuple((ry, rx) for ry in (-1, 0, 1) for rx in (-1, 0, 1))


def _round_up(x, m):
    return ((x + m - 1) // m) * m


def _end2end_kernel(x_ref, m_ref, w_ref, b_ref, o_ref,
                    pad_ref, patch_ref, act_ref, *,
                    H, W, n_layers, c_out, base, padlen, bt):
    """Fused n-layer 3x3 conv stack for a block of `bt` images.

    x_ref:     (bt, cin0, H*W)      input images, NCHW flattened over spatial
    m_ref:     (2, H*W)             column masks: [0] valid for rx=-1 taps,
                                    [1] valid for rx=+1 taps (0/1, f32)
    w_ref:     (L, cmax, 9*cmax)    packed bf16 weights, K laid out (dy,dx,ci)
    b_ref:     (L, cmax, 1)         packed f32 biases
    o_ref:     (bt, c_out, H*W)     output images, NCHW flattened over spatial
    pad_ref:   (cmax, bt*padlen)    f32 halo buffer; image i's interior lives
                                    in columns [i*padlen+base, i*padlen+base+HW)
    patch_ref: (9*cmax, bt*H*W)     bf16 persistent im2col patches
    act_ref:   (cmax, bt*H*W)       f32 layer-output staging buffer
    """
    HW = H * W
    cin0 = x_ref.shape[1]
    cmax = pad_ref.shape[0]

    # Re-zero the halo buffer each step (halo columns must be zero so that
    # y-out-of-range tap reads return 0; padded-channel rows must be zero/finite
    # for layer 0).  See module comment for why this is not gated on
    # program_id==0.
    pad_ref[...] = jnp.zeros_like(pad_ref)

    # Load this block's images into their per-image interiors.
    for img in range(bt):
        off = img * padlen + base
        pad_ref[0:cin0, off:off + HW] = x_ref[img].astype(jnp.float32)

    # Column masks, hoisted and pre-broadcast once (JAX does not CSE
    # broadcast_in_dim across the layer loop).
    mask_l = jnp.broadcast_to(m_ref[0:1, :], (cmax, HW))   # valid where x >= 1
    mask_r = jnp.broadcast_to(m_ref[1:2, :], (cmax, HW))   # valid where x <= W-2

    for l in range(n_layers):
        # im2col: store the 9 shifted (+x-border-masked) taps of every image
        # straight into the persistent bf16 patches scratch.
        for img in range(bt):
            seg = img * padlen + base
            col = img * HW
            for t, (ry, rx) in enumerate(_TAP_OFFSETS):
                start = seg + ry * W + rx
                s = pad_ref[:, start:start + HW]            # (cmax, HW) f32
                if rx == -1:
                    s = s * mask_l                          # kill row wrap
                elif rx == 1:
                    s = s * mask_r
                patch_ref[t * cmax:(t + 1) * cmax, col:col + HW] = (
                    s.astype(jnp.bfloat16))

        # One MXU matmul per layer over all bt images' lanes: output channels
        # on sublanes, (image, spatial) on lanes (lane-dense, NCHW-flattened).
        act_ref[...] = jnp.dot(w_ref[l], patch_ref[...],
                               preferred_element_type=jnp.float32) + b_ref[l]

        if l < n_layers - 1:
            # ReLU + write back as next layer's input (interior only; halo
            # columns stay zero for the whole stack).
            for img in range(bt):
                seg = img * padlen + base
                col = img * HW
                pad_ref[:, seg:seg + HW] = jnp.maximum(
                    act_ref[:, col:col + HW], 0.0)

    for img in range(bt):
        o_ref[img] = act_ref[0:c_out, img * HW:(img + 1) * HW].astype(o_ref.dtype)


def _pack_weight(w_oihw, cmax):
    """(Cout, Cin, 3, 3) -> (cmax, 9*cmax) bf16 with K laid out as (dy, dx, ci)."""
    cout, cin = w_oihw.shape[0], w_oihw.shape[1]
    w = jnp.transpose(w_oihw, (0, 2, 3, 1))                 # (Cout, 3, 3, Cin)
    w = jnp.pad(w, ((0, cmax - cout), (0, 0), (0, 0), (0, cmax - cin)))
    return w.reshape(cmax, 9 * cmax).astype(jnp.bfloat16)


def _pack_bias(b, cmax):
    return jnp.pad(b, (0, cmax - b.shape[0])).reshape(cmax, 1).astype(jnp.float32)


def _build_col_masks(H, W):
    """(2, H*W) 0/1 masks for the x boundary only.

    [0]: valid where x >= 1     (used by the three rx == -1 taps)
    [1]: valid where x <= W - 2 (used by the three rx == +1 taps)
    y out-of-range reads already land in the zeroed halo, so rx == 0 taps
    need no mask.
    """
    x_idx = jnp.arange(H * W, dtype=jnp.int32) % W
    mask_l = (x_idx >= 1).astype(jnp.float32)
    mask_r = (x_idx <= W - 2).astype(jnp.float32)
    return jnp.stack([mask_l, mask_r], axis=0)


def _layer_sequence(n_kernel):
    if n_kernel == 1:
        return ["conv1"]
    if n_kernel == 3:
        return ["conv1", "conv2", "conv3"]
    if n_kernel == 6:
        # Faithful to the PyTorch forward: conv2 is applied four times and
        # conv3/conv4/conv5 are never used.
        return ["conv1", "conv2", "conv2", "conv2", "conv2", "conv6"]
    raise ValueError("n_kernel must be 1, 3 or 6")


def _choose_bt(n, cap=8):
    """Images per grid step.  Keep >= 2 grid steps so v7x's two TensorCores
    both get work; cap keeps patches/pad scratch well under scoped VMEM on
    every generation (v5e's 16 MiB default included)."""
    if n <= 1:
        return 1
    return max(1, min(cap, (n + 1) // 2))


def end2end_forward(params, x_nchw, n_kernel):
    """Mirrors End2End.forward. x_nchw: (N, 3, H, W) -> (N, 3, H, W)."""
    N, cin0, H, W = x_nchw.shape
    HW = H * W
    names = _layer_sequence(n_kernel)
    L = len(names)

    c_out = params[names[-1]][0].shape[0]                    # always 3 here
    cmax = 16                  # multiple of 16 keeps bf16 tap slabs tile-aligned
    for nm in names:
        w, _ = params[nm]
        cmax = max(cmax, w.shape[0], w.shape[1])
    cmax = _round_up(cmax, 16)

    wstack = jnp.stack([_pack_weight(params[nm][0], cmax) for nm in names])
    bstack = jnp.stack([_pack_bias(params[nm][1], cmax) for nm in names])
    masks = _build_col_masks(H, W)

    bt = _choose_bt(N)
    n_pad = _round_up(N, bt)
    x_flat = x_nchw.reshape(N, cin0, HW).astype(jnp.float32)  # free reshape
    if n_pad != N:
        x_flat = jnp.pad(x_flat, ((0, n_pad - N), (0, 0), (0, 0)))

    base = _round_up(W + 1, 128)               # lane-aligned interior start
    padlen = _round_up(base + HW + W + 1, 128)  # room for +-(W+1) shifts

    kernel = functools.partial(_end2end_kernel, H=H, W=W, n_layers=L,
                               c_out=c_out, base=base, padlen=padlen, bt=bt)
    out = pl.pallas_call(
        kernel,
        out_shape=jax.ShapeDtypeStruct((n_pad, c_out, HW), jnp.float32),
        grid=(n_pad // bt,),
        in_specs=[
            pl.BlockSpec((bt, cin0, HW), lambda n: (n, 0, 0)),
            pl.BlockSpec((2, HW), lambda n: (0, 0)),
            pl.BlockSpec((L, cmax, 9 * cmax), lambda n: (0, 0, 0)),
            pl.BlockSpec((L, cmax, 1), lambda n: (0, 0, 0)),
        ],
        out_specs=pl.BlockSpec((bt, c_out, HW), lambda n: (n, 0, 0)),
        scratch_shapes=[
            pltpu.VMEM((cmax, bt * padlen), jnp.float32),     # haloed activations
            pltpu.VMEM((9 * cmax, bt * HW), jnp.bfloat16),    # im2col patches
            pltpu.VMEM((cmax, bt * HW), jnp.float32),         # layer output
        ],
        compiler_params=pltpu.CompilerParams(
            dimension_semantics=("parallel",)),
    )(x_flat, masks, wstack, bstack)
    return out[:N].reshape(N, c_out, H, W)                    # free reshape (NCHW)


def _init_conv_params(key, cin, cout):
    """PyTorch-style default Conv2d init (uniform +-1/sqrt(fan_in)), OIHW."""
    kw, kb = jax.random.split(key)
    bound = 1.0 / float(cin * 9) ** 0.5
    w = jax.random.uniform(kw, (cout, cin, 3, 3), jnp.float32, -bound, bound)
    b = jax.random.uniform(kb, (cout,), jnp.float32, -bound, bound)
    return w, b


def init_end2end_params(key, n_kernel):
    if n_kernel == 1:
        return {"conv1": _init_conv_params(key, 3, 3)}
    if n_kernel == 3:
        k1, k2, k3 = jax.random.split(key, 3)
        return {"conv1": _init_conv_params(k1, 3, 16),
                "conv2": _init_conv_params(k2, 16, 16),
                "conv3": _init_conv_params(k3, 16, 3)}
    if n_kernel == 6:
        ks = jax.random.split(key, 6)
        return {"conv1": _init_conv_params(ks[0], 3, 32),
                "conv2": _init_conv_params(ks[1], 32, 32),
                "conv3": _init_conv_params(ks[2], 32, 32),
                "conv4": _init_conv_params(ks[3], 32, 32),
                "conv5": _init_conv_params(ks[4], 32, 32),
                "conv6": _init_conv_params(ks[5], 32, 3)}
    raise ValueError("n_kernel must be 1, 3 or 6")


def _ref_forward(params, x, n_kernel):
    """Pure-JAX f32 reference (lax.conv_general_dilated)."""
    def conv(x, w, b, relu):
        y = jax.lax.conv_general_dilated(
            x, w, window_strides=(1, 1), padding="SAME",
            dimension_numbers=("NCHW", "OIHW", "NCHW"))
        y = y + b.reshape(1, -1, 1, 1)
        return jnp.maximum(y, 0.0) if relu else y
    names = _layer_sequence(n_kernel)
    for i, nm in enumerate(names):
        x = conv(x, *params[nm], relu=(i < len(names) - 1))
    return x


if __name__ == "__main__":
    key = jax.random.PRNGKey(0)
    kx, kp = jax.random.split(key)

    N, C, H, W = 4, 3, 16, 16          # N=4 -> bt=2, grid=2 (exercises batching)
    x = jax.random.normal(kx, (N, C, H, W), jnp.float32)

    fwd = jax.jit(end2end_forward, static_argnums=2)

    for n_kernel in (1, 3, 6):
        params = init_end2end_params(jax.random.fold_in(kp, n_kernel), n_kernel)
        out = jax.block_until_ready(fwd(params, x, n_kernel))
        assert out.shape == (N, 3, H, W), out.shape
        ref = _ref_forward(params, x, n_kernel)
        err = float(jnp.max(jnp.abs(out - ref)))
        # bf16 MXU operands -> relaxed tolerance vs the f32 reference.
        assert err < 0.1, (n_kernel, err)

    print("KERNEL_OK")
</pallas_src>

<mosaic_0001>
module attributes {stable_mosaic.version = 11 : i64} {
  func.func @_end2end_kernel(%arg0: i32, %arg1: memref<2x3x256xf32, #tpu.memory_space<vmem>>, %arg2: memref<2x256xf32, #tpu.memory_space<vmem>>, %arg3: memref<1x16x144xbf16, #tpu.memory_space<vmem>>, %arg4: memref<1x16x1xf32, #tpu.memory_space<vmem>>, %arg5: memref<2x3x256xf32, #tpu.memory_space<vmem>>, %arg6: memref<16x1024xf32, #tpu.memory_space<vmem>>, %arg7: memref<144x512xbf16, #tpu.memory_space<vmem>>, %arg8: memref<16x512xf32, #tpu.memory_space<vmem>>) attributes {dimension_semantics = [#tpu.dimension_semantics<parallel>], iteration_bounds = array<i64: 2>, scalar_prefetch = 0 : i64, scratch_operands = 3 : i64, tpu.core_type = #tpu.core_type<tc>, window_params = [{transform_indices = @transform_0, window_bounds = array<i64: 2, 3, 256>}, {pipeline_mode = #tpu.pipeline_mode<synchronous>, transform_indices = @transform_1, window_bounds = array<i64: 2, 256>}, {pipeline_mode = #tpu.pipeline_mode<synchronous>, transform_indices = @transform_2, window_bounds = array<i64: 1, 16, 144>}, {pipeline_mode = #tpu.pipeline_mode<synchronous>, transform_indices = @transform_3, window_bounds = array<i64: 1, 16, 1>}, {transform_indices = @transform_4, window_bounds = array<i64: 2, 3, 256>}]} {
    %cst = arith.constant 0.000000e+00 : f32
    %0 = vector.broadcast %cst : f32 to vector<16x1024xf32>
    %c0 = arith.constant 0 : index
    %c0_0 = arith.constant 0 : index
    %1 = vector.load %arg6[%c0, %c0_0] : memref<16x1024xf32, #tpu.memory_space<vmem>>, vector<16x1024xf32>
    tpu.vector_store %arg6[%c0, %c0_0], %0 {strides = array<i32>} : memref<16x1024xf32, #tpu.memory_space<vmem>>, vector<16x1024xf32>,
    %c0_1 = arith.constant 0 : index
    %c0_2 = arith.constant 0 : index
    %c0_3 = arith.constant 0 : index
    %2 = vector.load %arg1[%c0_1, %c0_2, %c0_3] : memref<2x3x256xf32, #tpu.memory_space<vmem>>, vector<1x3x256xf32>
    %3 = vector.shape_cast %2 : vector<1x3x256xf32> to vector<3x256xf32>
    %c0_4 = arith.constant 0 : index
    %c128 = arith.constant 128 : index
    %4 = vector.load %arg6[%c0_4, %c128] : memref<16x1024xf32, #tpu.memory_space<vmem>>, vector<3x256xf32>
    tpu.vector_store %arg6[%c0_4, %c128], %3 {strides = array<i32>} : memref<16x1024xf32, #tpu.memory_space<vmem>>, vector<3x256xf32>,
    %c1 = arith.constant 1 : index
    %c0_5 = arith.constant 0 : index
    %c0_6 = arith.constant 0 : index
    %5 = vector.load %arg1[%c1, %c0_5, %c0_6] : memref<2x3x256xf32, #tpu.memory_space<vmem>>, vector<1x3x256xf32>
    %6 = vector.shape_cast %5 : vector<1x3x256xf32> to vector<3x256xf32>
    %c0_7 = arith.constant 0 : index
    %c640 = arith.constant 640 : index
    %7 = vector.load %arg6[%c0_7, %c640] : memref<16x1024xf32, #tpu.memory_space<vmem>>, vector<3x256xf32>
    tpu.vector_store %arg6[%c0_7, %c640], %6 {strides = array<i32>} : memref<16x1024xf32, #tpu.memory_space<vmem>>, vector<3x256xf32>,
    %c0_8 = arith.constant 0 : index
    %c0_9 = arith.constant 0 : index
    %8 = vector.load %arg2[%c0_8, %c0_9] : memref<2x256xf32, #tpu.memory_space<vmem>>, vector<1x256xf32>
    %9 = vector.shape_cast %8 : vector<1x256xf32> to vector<1x256xf32>
    %10 = vector.broadcast %9 : vector<1x256xf32> to vector<16x256xf32>
    %c1_10 = arith.constant 1 : index
    %c0_11 = arith.constant 0 : index
    %11 = vector.load %arg2[%c1_10, %c0_11] : memref<2x256xf32, #tpu.memory_space<vmem>>, vector<1x256xf32>
    %12 = vector.shape_cast %11 : vector<1x256xf32> to vector<1x256xf32>
    %13 = vector.broadcast %12 : vector<1x256xf32> to vector<16x256xf32>
    %c0_12 = arith.constant 0 : index
    %c111 = arith.constant 111 : index
    %14 = vector.load %arg6[%c0_12, %c111] : memref<16x1024xf32, #tpu.memory_space<vmem>>, vector<16x256xf32>
    %15 = arith.mulf %14, %10 : vector<16x256xf32>
    %16 = arith.truncf %15 : vector<16x256xf32> to vector<16x256xbf16>
    %c0_13 = arith.constant 0 : index
    %c0_14 = arith.constant 0 : index
    %17 = vector.load %arg7[%c0_13, %c0_14] : memref<144x512xbf16, #tpu.memory_space<vmem>>, vector<16x256xbf16>
    tpu.vector_store %arg7[%c0_13, %c0_14], %16 {strides = array<i32>} : memref<144x512xbf16, #tpu.memory_space<vmem>>, vector<16x256xbf16>,
    %c0_15 = arith.constant 0 : index
    %c112 = arith.constant 112 : index
    %18 = vector.load %arg6[%c0_15, %c112] : memref<16x1024xf32, #tpu.memory_space<vmem>>, vector<16x256xf32>
    %19 = arith.truncf %18 : vector<16x256xf32> to vector<16x256xbf16>
    %c16 = arith.constant 16 : index
    %c0_16 = arith.constant 0 : index
    %20 = vector.load %arg7[%c16, %c0_16] : memref<144x512xbf16, #tpu.memory_space<vmem>>, vector<16x256xbf16>
    tpu.vector_store %arg7[%c16, %c0_16], %19 {strides = array<i32>} : memref<144x512xbf16, #tpu.memory_space<vmem>>, vector<16x256xbf16>,
    %c0_17 = arith.constant 0 : index
    %c113 = arith.constant 113 : index
    %21 = vector.load %arg6[%c0_17, %c113] : memref<16x1024xf32, #tpu.memory_space<vmem>>, vector<16x256xf32>
    %22 = arith.mulf %21, %13 : vector<16x256xf32>
    %23 = arith.truncf %22 : vector<16x256xf32> to vector<16x256xbf16>
    %c32 = arith.constant 32 : index
    %c0_18 = arith.constant 0 : index
    %24 = vector.load %arg7[%c32, %c0_18] : memref<144x512xbf16, #tpu.memory_space<vmem>>, vector<16x256xbf16>
    tpu.vector_store %arg7[%c32, %c0_18], %23 {strides = array<i32>} : memref<144x512xbf16, #tpu.memory_space<vmem>>, vector<16x256xbf16>,
    %c0_19 = arith.constant 0 : index
    %c127 = arith.constant 127 : index
    %25 = vector.load %arg6[%c0_19, %c127] : memref<16x1024xf32, #tpu.memory_space<vmem>>, vector<16x256xf32>
    %26 = arith.mulf %25, %10 : vector<16x256xf32>
    %27 = arith.truncf %26 : vector<16x256xf32> to vector<16x256xbf16>
    %c48 = arith.constant 48 : index
    %c0_20 = arith.constant 0 : index
    %28 = vector.load %arg7[%c48, %c0_20] : memref<144x512xbf16, #tpu.memory_space<vmem>>, vector<16x256xbf16>
    tpu.vector_store %arg7[%c48, %c0_20], %27 {strides = array<i32>} : memref<144x512xbf16, #tpu.memory_space<vmem>>, vector<16x256xbf16>,
    %c0_21 = arith.constant 0 : index
    %c128_22 = arith.constant 128 : index
    %29 = vector.load %arg6[%c0_21, %c128_22] : memref<16x1024xf32, #tpu.memory_space<vmem>>, vector<16x256xf32>
    %30 = arith.truncf %29 : vector<16x256xf32> to vector<16x256xbf16>
    %c64 = arith.constant 64 : index
    %c0_23 = arith.constant 0 : index
    %31 = vector.load %arg7[%c64, %c0_23] : memref<144x512xbf16, #tpu.memory_space<vmem>>, vector<16x256xbf16>
    tpu.vector_store %arg7[%c64, %c0_23], %30 {strides = array<i32>} : memref<144x512xbf16, #tpu.memory_space<vmem>>, vector<16x256xbf16>,
    %c0_24 = arith.constant 0 : index
    %c129 = arith.constant 129 : index
    %32 = vector.load %arg6[%c0_24, %c129] : memref<16x1024xf32, #tpu.memory_space<vmem>>, vector<16x256xf32>
    %33 = arith.mulf %32, %13 : vector<16x256xf32>
    %34 = arith.truncf %33 : vector<16x256xf32> to vector<16x256xbf16>
    %c80 = arith.constant 80 : index
    %c0_25 = arith.constant 0 : index
    %35 = vector.load %arg7[%c80, %c0_25] : memref<144x512xbf16, #tpu.memory_space<vmem>>, vector<16x256xbf16>
    tpu.vector_store %arg7[%c80, %c0_25], %34 {strides = array<i32>} : memref<144x512xbf16, #tpu.memory_space<vmem>>, vector<16x256xbf16>,
    %c0_26 = arith.constant 0 : index
    %c143 = arith.constant 143 : index
    %36 = vector.load %arg6[%c0_26, %c143] : memref<16x1024xf32, #tpu.memory_space<vmem>>, vector<16x256xf32>
    %37 = arith.mulf %36, %10 : vector<16x256xf32>
    %38 = arith.truncf %37 : vector<16x256xf32> to vector<16x256xbf16>
    %c96 = arith.constant 96 : index
    %c0_27 = arith.constant 0 : index
    %39 = vector.load %arg7[%c96, %c0_27] : memref<144x512xbf16, #tpu.memory_space<vmem>>, vector<16x256xbf16>
    tpu.vector_store %arg7[%c96, %c0_27], %38 {strides = array<i32>} : memref<144x512xbf16, #tpu.memory_space<vmem>>, vector<16x256xbf16>,
    %c0_28 = arith.constant 0 : index
    %c144 = arith.constant 144 : index
    %40 = vector.load %arg6[%c0_28, %c144] : memref<16x1024xf32, #tpu.memory_space<vmem>>, vector<16x256xf32>
    %41 = arith.truncf %40 : vector<16x256xf32> to vector<16x256xbf16>
    %c112_29 = arith.constant 112 : index
    %c0_30 = arith.constant 0 : index
    %42 = vector.load %arg7[%c112_29, %c0_30] : memref<144x512xbf16, #tpu.memory_space<vmem>>, vector<16x256xbf16>
    tpu.vector_store %arg7[%c112_29, %c0_30], %41 {strides = array<i32>} : memref<144x512xbf16, #tpu.memory_space<vmem>>, vector<16x256xbf16>,
    %c0_31 = arith.constant 0 : index
    %c145 = arith.constant 145 : index
    %43 = vector.load %arg6[%c0_31, %c145] : memref<16x1024xf32, #tpu.memory_space<vmem>>, vector<16x256xf32>
    %44 = arith.mulf %43, %13 : vector<16x256xf32>
    %45 = arith.truncf %44 : vector<16x256xf32> to vector<16x256xbf16>
    %c128_32 = arith.constant 128 : index
    %c0_33 = arith.constant 0 : index
    %46 = vector.load %arg7[%c128_32, %c0_33] : memref<144x512xbf16, #tpu.memory_space<vmem>>, vector<16x256xbf16>
    tpu.vector_store %arg7[%c128_32, %c0_33], %45 {strides = array<i32>} : memref<144x512xbf16, #tpu.memory_space<vmem>>, vector<16x256xbf16>,
    %c0_34 = arith.constant 0 : index
    %c623 = arith.constant 623 : index
    %47 = vector.load %arg6[%c0_34, %c623] : memref<16x1024xf32, #tpu.memory_space<vmem>>, vector<16x256xf32>
    %48 = arith.mulf %47, %10 : vector<16x256xf32>
    %49 = arith.truncf %48 : vector<16x256xf32> to vector<16x256xbf16>
    %c0_35 = arith.constant 0 : index
    %c256 = arith.constant 256 : index
    %50 = vector.load %arg7[%c0_35, %c256] : memref<144x512xbf16, #tpu.memory_space<vmem>>, vector<16x256xbf16>
    tpu.vector_store %arg7[%c0_35, %c256], %49 {strides = array<i32>} : memref<144x512xbf16, #tpu.memory_space<vmem>>, vector<16x256xbf16>,
    %c0_36 = arith.constant 0 : index
    %c624 = arith.constant 624 : index
    %51 = vector.load %arg6[%c0_36, %c624] : memref<16x1024xf32, #tpu.memory_space<vmem>>, vector<16x256xf32>
    %52 = arith.truncf %51 : vector<16x256xf32> to vector<16x256xbf16>
    %c16_37 = arith.constant 16 : index
    %c256_38 = arith.constant 256 : index
    %53 = vector.load %arg7[%c16_37, %c256_38] : memref<144x512xbf16, #tpu.memory_space<vmem>>, vector<16x256xbf16>
    tpu.vector_store %arg7[%c16_37, %c256_38], %52 {strides = array<i32>} : memref<144x512xbf16, #tpu.memory_space<vmem>>, vector<16x256xbf16>,
    %c0_39 = arith.constant 0 : index
    %c625 = arith.constant 625 : index
    %54 = vector.load %arg6[%c0_39, %c625] : memref<16x1024xf32, #tpu.memory_space<vmem>>, vector<16x256xf32>
    %55 = arith.mulf %54, %13 : vector<16x256xf32>
    %56 = arith.truncf %55 : vector<16x256xf32> to vector<16x256xbf16>
    %c32_40 = arith.constant 32 : index
    %c256_41 = arith.constant 256 : index
    %57 = vector.load %arg7[%c32_40, %c256_41] : memref<144x512xbf16, #tpu.memory_space<vmem>>, vector<16x256xbf16>
    tpu.vector_store %arg7[%c32_40, %c256_41], %56 {strides = array<i32>} : memref<144x512xbf16, #tpu.memory_space<vmem>>, vector<16x256xbf16>,
    %c0_42 = arith.constant 0 : index
    %c639 = arith.constant 639 : index
    %58 = vector.load %arg6[%c0_42, %c639] : memref<16x1024xf32, #tpu.memory_space<vmem>>, vector<16x256xf32>
    %59 = arith.mulf %58, %10 : vector<16x256xf32>
    %60 = arith.truncf %59 : vector<16x256xf32> to vector<16x256xbf16>
    %c48_43 = arith.constant 48 : index
    %c256_44 = arith.constant 256 : index
    %61 = vector.load %arg7[%c48_43, %c256_44] : memref<144x512xbf16, #tpu.memory_space<vmem>>, vector<16x256xbf16>
    tpu.vector_store %arg7[%c48_43, %c256_44], %60 {strides = array<i32>} : memref<144x512xbf16, #tpu.memory_space<vmem>>, vector<16x256xbf16>,
    %c0_45 = arith.constant 0 : index
    %c640_46 = arith.constant 640 : index
    %62 = vector.load %arg6[%c0_45, %c640_46] : memref<16x1024xf32, #tpu.memory_space<vmem>>, vector<16x256xf32>
    %63 = arith.truncf %62 : vector<16x256xf32> to vector<16x256xbf16>
    %c64_47 = arith.constant 64 : index
    %c256_48 = arith.constant 256 : index
    %64 = vector.load %arg7[%c64_47, %c256_48] : memref<144x512xbf16, #tpu.memory_space<vmem>>, vector<16x256xbf16>
    tpu.vector_store %arg7[%c64_47, %c256_48], %63 {strides = array<i32>} : memref<144x512xbf16, #tpu.memory_space<vmem>>, vector<16x256xbf16>,
    %c0_49 = arith.constant 0 : index
    %c641 = arith.constant 641 : index
    %65 = vector.load %arg6[%c0_49, %c641] : memref<16x1024xf32, #tpu.memory_space<vmem>>, vector<16x256xf32>
    %66 = arith.mulf %65, %13 : vector<16x256xf32>
    %67 = arith.truncf %66 : vector<16x256xf32> to vector<16x256xbf16>
    %c80_50 = arith.constant 80 : index
    %c256_51 = arith.constant 256 : index
    %68 = vector.load %arg7[%c80_50, %c256_51] : memref<144x512xbf16, #tpu.memory_space<vmem>>, vector<16x256xbf16>
    tpu.vector_store %arg7[%c80_50, %c256_51], %67 {strides = array<i32>} : memref<144x512xbf16, #tpu.memory_space<vmem>>, vector<16x256xbf16>,
    %c0_52 = arith.constant 0 : index
    %c655 = arith.constant 655 : index
    %69 = vector.load %arg6[%c0_52, %c655] : memref<16x1024xf32, #tpu.memory_space<vmem>>, vector<16x256xf32>
    %70 = arith.mulf %69, %10 : vector<16x256xf32>
    %71 = arith.truncf %70 : vector<16x256xf32> to vector<16x256xbf16>
    %c96_53 = arith.constant 96 : index
    %c256_54 = arith.constant 256 : index
    %72 = vector.load %arg7[%c96_53, %c256_54] : memref<144x512xbf16, #tpu.memory_space<vmem>>, vector<16x256xbf16>
    tpu.vector_store %arg7[%c96_53, %c256_54], %71 {strides = array<i32>} : memref<144x512xbf16, #tpu.memory_space<vmem>>, vector<16x256xbf16>,
    %c0_55 = arith.constant 0 : index
    %c656 = arith.constant 656 : index
    %73 = vector.load %arg6[%c0_55, %c656] : memref<16x1024xf32, #tpu.memory_space<vmem>>, vector<16x256xf32>
    %74 = arith.truncf %73 : vector<16x256xf32> to vector<16x256xbf16>
    %c112_56 = arith.constant 112 : index
    %c256_57 = arith.constant 256 : index
    %75 = vector.load %arg7[%c112_56, %c256_57] : memref<144x512xbf16, #tpu.memory_space<vmem>>, vector<16x256xbf16>
    tpu.vector_store %arg7[%c112_56, %c256_57], %74 {strides = array<i32>} : memref<144x512xbf16, #tpu.memory_space<vmem>>, vector<16x256xbf16>,
    %c0_58 = arith.constant 0 : index
    %c657 = arith.constant 657 : index
    %76 = vector.load %arg6[%c0_58, %c657] : memref<16x1024xf32, #tpu.memory_space<vmem>>, vector<16x256xf32>
    %77 = arith.mulf %76, %13 : vector<16x256xf32>
    %78 = arith.truncf %77 : vector<16x256xf32> to vector<16x256xbf16>
    %c128_59 = arith.constant 128 : index
    %c256_60 = arith.constant 256 : index
    %79 = vector.load %arg7[%c128_59, %c256_60] : memref<144x512xbf16, #tpu.memory_space<vmem>>, vector<16x256xbf16>
    tpu.vector_store %arg7[%c128_59, %c256_60], %78 {strides = array<i32>} : memref<144x512xbf16, #tpu.memory_space<vmem>>, vector<16x256xbf16>,
    %c0_61 = arith.constant 0 : index
    %c0_62 = arith.constant 0 : index
    %c0_63 = arith.constant 0 : index
    %80 = vector.load %arg3[%c0_61, %c0_62, %c0_63] : memref<1x16x144xbf16, #tpu.memory_space<vmem>>, vector<1x16x144xbf16>
    %81 = vector.shape_cast %80 : vector<1x16x144xbf16> to vector<16x144xbf16>
    %c0_64 = arith.constant 0 : index
    %c0_65 = arith.constant 0 : index
    %82 = vector.load %arg7[%c0_64, %c0_65] : memref<144x512xbf16, #tpu.memory_space<vmem>>, vector<144x512xbf16>
    %cst_66 = arith.constant dense<0.000000e+00> : vector<16x512xf32>
    %83 = tpu.matmul %81, %82, %cst_66 {dimension_numbers = #tpu.dot_dimension_numbers<[1], [0], [0], [1], [0, 0, 1, 1], [], []>} : vector<16x144xbf16>, vector<144x512xbf16>, vector<16x512xf32> -> vector<16x512xf32>
    %c0_67 = arith.constant 0 : index
    %c0_68 = arith.constant 0 : index
    %c0_69 = arith.constant 0 : index
    %84 = vector.load %arg4[%c0_67, %c0_68, %c0_69] : memref<1x16x1xf32, #tpu.memory_space<vmem>>, vector<1x16x1xf32>
    %85 = vector.shape_cast %84 : vector<1x16x1xf32> to vector<16x1xf32>
    %86 = vector.broadcast %85 : vector<16x1xf32> to vector<16x512xf32>
    %87 = arith.addf %83, %86 : vector<16x512xf32>
    %c0_70 = arith.constant 0 : index
    %c0_71 = arith.constant 0 : index
    %88 = vector.load %arg8[%c0_70, %c0_71] : memref<16x512xf32, #tpu.memory_space<vmem>>, vector<16x512xf32>
    tpu.vector_store %arg8[%c0_70, %c0_71], %87 {strides = array<i32>} : memref<16x512xf32, #tpu.memory_space<vmem>>, vector<16x512xf32>,
    %c0_72 = arith.constant 0 : index
    %c0_73 = arith.constant 0 : index
    %89 = vector.load %arg8[%c0_72, %c0_73] : memref<16x512xf32, #tpu.memory_space<vmem>>, vector<3x256xf32>
    %c0_74 = arith.constant 0 : index
    %c0_75 = arith.constant 0 : index
    %c0_76 = arith.constant 0 : index
    %90 = vector.load %arg5[%c0_74, %c0_75, %c0_76] : memref<2x3x256xf32, #tpu.memory_space<vmem>>, vector<1x3x256xf32>
    %91 = vector.shape_cast %90 : vector<1x3x256xf32> to vector<3x256xf32>
    %92 = vector.shape_cast %89 : vector<3x256xf32> to vector<1x3x256xf32>
    tpu.vector_store %arg5[%c0_74, %c0_75, %c0_76], %92 {strides = array<i32>} : memref<2x3x256xf32, #tpu.memory_space<vmem>>, vector<1x3x256xf32>,
    %c0_77 = arith.constant 0 : index
    %c256_78 = arith.constant 256 : index
    %93 = vector.load %arg8[%c0_77, %c256_78] : memref<16x512xf32, #tpu.memory_space<vmem>>, vector<3x256xf32>
    %c1_79 = arith.constant 1 : index
    %c0_80 = arith.constant 0 : index
    %c0_81 = arith.constant 0 : index
    %94 = vector.load %arg5[%c1_79, %c0_80, %c0_81] : memref<2x3x256xf32, #tpu.memory_space<vmem>>, vector<1x3x256xf32>
    %95 = vector.shape_cast %94 : vector<1x3x256xf32> to vector<3x256xf32>
    %96 = vector.shape_cast %93 : vector<3x256xf32> to vector<1x3x256xf32>
    tpu.vector_store %arg5[%c1_79, %c0_80, %c0_81], %96 {strides = array<i32>} : memref<2x3x256xf32, #tpu.memory_space<vmem>>, vector<1x3x256xf32>,
    return
  }
  func.func @transform_0(%arg0: i32) -> (i32, i32, i32) {
    %c0_i32 = arith.constant 0 : i32
    %c0_i32_0 = arith.constant 0 : i32
    %c0_i32_1 = arith.constant 0 : i32
    return %arg0, %c0_i32, %c0_i32_0 : i32, i32, i32
  }
  func.func @transform_1(%arg0: i32) -> (i32, i32) {
    %c0_i32 = arith.constant 0 : i32
    %c0_i32_0 = arith.constant 0 : i32
    %c0_i32_1 = arith.constant 0 : i32
    return %c0_i32, %c0_i32_0 : i32, i32
  }
  func.func @transform_2(%arg0: i32) -> (i32, i32, i32) {
    %c0_i32 = arith.constant 0 : i32
    %c0_i32_0 = arith.constant 0 : i32
    %c0_i32_1 = arith.constant 0 : i32
    %c0_i32_2 = arith.constant 0 : i32
    return %c0_i32, %c0_i32_0, %c0_i32_1 : i32, i32, i32
  }
  func.func @transform_3(%arg0: i32) -> (i32, i32, i32) {
    %c0_i32 = arith.constant 0 : i32
    %c0_i32_0 = arith.constant 0 : i32
    %c0_i32_1 = arith.constant 0 : i32
    %c0_i32_2 = arith.constant 0 : i32
    return %c0_i32, %c0_i32_0, %c0_i32_1 : i32, i32, i32
  }
  func.func @transform_4(%arg0: i32) -> (i32, i32, i32) {
    %c0_i32 = arith.constant 0 : i32
    %c0_i32_0 = arith.constant 0 : i32
    %c0_i32_1 = arith.constant 0 : i32
    return %arg0, %c0_i32, %c0_i32_0 : i32, i32, i32
  }
}

</mosaic_0001>

<llo_original>
// kernel: end2end_forward.1
$region0: #{end2end_forward.1}
  #allocation0 [shape = 'u32[]', space=smem, size = 0x4, offset = 0x4, fixed_abs, tag = 'smem constant byte address 0x4 - core index']
  #allocation1 [shape = 'u32[72,128]{1,0:T(1,128)}', space=vmem, size = 0x9000, scoped, tag = 'internal scratch']
  #allocation2 [shape = 'f32[16,1024]{1,0:T(8,128)}', space=vmem, size = 0x10000, scoped, tag = 'scratch operand']
  #allocation3 [shape = 'bf16[144,512]{1,0:T(8,128)(2,1)}', space=vmem, size = 0x24000, scoped, tag = 'scratch operand']
  #allocation4 [shape = 'f32[16,512]{1,0:T(8,128)}', space=vmem, size = 0x8000, scoped, tag = 'scratch operand']
  %s0 = inlined_call_operand.vmem [shape: f32[4,3,256], index: 0, kind: input, shape index: {}]
  %s1 = inlined_call_operand.vmem [shape: f32[2,256], index: 1, kind: input, shape index: {}]
  %s2 = inlined_call_operand.vmem [shape: bf16[1,16,144], index: 2, kind: input, shape index: {}]
  %s3 = inlined_call_operand.vmem [shape: f32[1,16,1], index: 3, kind: input, shape index: {}]
  %s4 = inlined_call_operand.vmem [shape: f32[4,3,256], index: 4, kind: output, shape index: {}]
  %s5 = sld [smem:[#allocation0]]
  $region49: #{end2end_forward.1} parent=0
    _
  %s7 = ssub.s32 1, %s5
  %s8 = scalar_select 0, %s7, %s5
  loop: start=0, step=1, limit=4
  $region2: #{end2end_forward.1} parent=0 // loop_pre_header
    _
  $region3: #{end2end_forward.1} parent=0 // loop_header
    %s10 = sphi 0, %s14
    %p11 = scmp.ge.s32.totalorder %s10, 4
    %s20 = sphi 0, %s22
    %s23 = sphi 0, %s20
    %s24 = sphi 0, %s23
    %s40 = sphi 0, %s24
    %s44 = sphi 0, %s44
    %s46 = sphi 0, %s44
    %s47 = sphi 0, %s46
    %s61 = sphi 0, %s47
    %s65 = sphi 0, %s65
    %s67 = sphi 0, %s65
    %s68 = sphi 0, %s67
    %s82 = sphi 0, %s68
    %s86 = sphi 0, %s86
    %s88 = sphi 0, %s86
    %s89 = sphi 0, %s88
    %s103 = sphi 0, %s89
    %s109 = sphi 0, %s111
    %s112 = sphi 0, %s109
    %s113 = sphi 0, %s112
    %s129 = sphi 0, %s113
  $region4: #{end2end_forward.1} parent=0 // loop_header_branch
    %13 = sbr.rel (%p11) target = $region8
  $region5: #{end2end_forward.1} parent=0 // loop_body
    %s15 = ssub.s32 %s10, 1
    %s16 = ssub.s32 %s10, 2
    %s17 = sadd.s32 %s10, 1
    %s18 = ssub.s32 %s10, %s17
    %p19 = scmp.eq.s32.totalorder %s18, 0
    %s21 = sadd.s32 %s20, 1
    %s22 = scalar_select %p19, %s20, %s21
    %p25 = pneg %p19
    %p26 = scmp.eq.s32.totalorder %s10, 1
    %p27 = por %p25, %p26
    %p28 = scmp.ne.s32.totalorder %s20, %s23
    %p29 = scmp.eq.s32.totalorder %s10, 0
    %p30 = por %p28, %p29
    %p31 = scmp.ne.s32.totalorder %s20, %s23
    %p32 = scmp.eq.s32.totalorder %s15, 1
    %p33 = por %p31, %p32
    %p34 = scmp.ne.s32.totalorder %s23, %s24
    %p35 = scmp.eq.s32.totalorder %s15, 0
    %p36 = por %p34, %p35
    %p37 = scmp.ne.s32.totalorder %s23, %s24
    %p38 = scmp.eq.s32.totalorder %s16, 1
    %p39 = por %p37, %p38
    %p41 = scmp.ne.s32.totalorder %s24, %s40
    %p42 = scmp.eq.s32.totalorder %s16, 0
    %p43 = por %p41, %p42
    %s45 = sadd.s32 %s44, 1
    %p48 = scmp.eq.s32.totalorder %s10, 1
    %p49 = scmp.ne.s32.totalorder %s44, %s46
    %p50 = scmp.eq.s32.totalorder %s10, 0
    %p51 = por %p49, %p50
    %p52 = scmp.ne.s32.totalorder %s44, %s46
    %p53 = scmp.eq.s32.totalorder %s15, 1
    %p54 = por %p52, %p53
    %p55 = scmp.ne.s32.totalorder %s46, %s47
    %p56 = scmp.eq.s32.totalorder %s15, 0
    %p57 = por %p55, %p56
    %p58 = scmp.ne.s32.totalorder %s46, %s47
    %p59 = scmp.eq.s32.totalorder %s16, 1
    %p60 = por %p58, %p59
    %p62 = scmp.ne.s32.totalorder %s47, %s61
    %p63 = scmp.eq.s32.totalorder %s16, 0
    %p64 = por %p62, %p63
    %s66 = sadd.s32 %s65, 1
    %p69 = scmp.eq.s32.totalorder %s10, 1
    %p70 = scmp.ne.s32.totalorder %s65, %s67
    %p71 = scmp.eq.s32.totalorder %s10, 0
    %p72 = por %p70, %p71
    %p73 = scmp.ne.s32.totalorder %s65, %s67
    %p74 = scmp.eq.s32.totalorder %s15, 1
    %p75 = por %p73, %p74
    %p76 = scmp.ne.s32.totalorder %s67, %s68
    %p77 = scmp.eq.s32.totalorder %s15, 0
    %p78 = por %p76, %p77
    %p79 = scmp.ne.s32.totalorder %s67, %s68
    %p80 = scmp.eq.s32.totalorder %s16, 1
    %p81 = por %p79, %p80
    %p83 = scmp.ne.s32.totalorder %s68, %s82
    %p84 = scmp.eq.s32.totalorder %s16, 0
    %p85 = por %p83, %p84
    %s87 = sadd.s32 %s86, 1
    %p90 = scmp.eq.s32.totalorder %s10, 1
    %p91 = scmp.ne.s32.totalorder %s86, %s88
    %p92 = scmp.eq.s32.totalorder %s10, 0
    %p93 = por %p91, %p92
    %p94 = scmp.ne.s32.totalorder %s86, %s88
    %p95 = scmp.eq.s32.totalorder %s15, 1
    %p96 = por %p94, %p95
    %p97 = scmp.ne.s32.totalorder %s88, %s89
    %p98 = scmp.eq.s32.totalorder %s15, 0
    %p99 = por %p97, %p98
    %p100 = scmp.ne.s32.totalorder %s88, %s89
    %p101 = scmp.eq.s32.totalorder %s16, 1
    %p102 = por %p100, %p101
    %p104 = scmp.ne.s32.totalorder %s89, %s103
    %p105 = scmp.eq.s32.totalorder %s16, 0
    %p106 = por %p104, %p105
    %s107 = ssub.s32 %s10, %s17
    %p108 = scmp.eq.s32.totalorder %s107, 0
    %s110 = sadd.s32 %s109, 1
    %s111 = scalar_select %p108, %s109, %s110
    %p114 = pneg %p108
    %p115 = scmp.eq.s32.totalorder %s10, 1
    %p116 = por %p114, %p115
    %p117 = scmp.ne.s32.totalorder %s109, %s112
    %p118 = scmp.eq.s32.totalorder %s10, 0
    %p119 = por %p117, %p118
    %p120 = scmp.ne.s32.totalorder %s109, %s112
    %p121 = scmp.eq.s32.totalorder %s15, 1
    %p122 = por %p120, %p121
    %p123 = scmp.ne.s32.totalorder %s112, %s113
    %p124 = scmp.eq.s32.totalorder %s15, 0
    %p125 = por %p123, %p124
    %p126 = scmp.ne.s32.totalorder %s112, %s113
    %p127 = scmp.eq.s32.totalorder %s16, 1
    %p128 = por %p126, %p127
    %p130 = scmp.ne.s32.totalorder %s113, %s129
    %p131 = scmp.eq.s32.totalorder %s16, 0
    %p132 = por %p130, %p131
    %p133 = scmp.le.s32.totalorder 1, %s10
    %p134 = scmp.lt.s32.totalorder %s10, 3
    %p135 = pnand %p133, %p134
    %p136 = pneg %p135
    // Predicated region
    $region9: #{end2end_forward.1} parent=5 // pred_check
      _
    $region10: #{end2end_forward.1} parent=5 // pred_check_branch
      %138 = sbr.rel (%p135) target = $region12
    $region11: #{end2end_forward.1} parent=5 // pred_region
      %s139 = ssub.s32 %s10, 1
      // Predicated region
      $region13: #{end2end_forward.1} parent=11 // pred_check
        %p140 = pneg %p57
      $region14: #{end2end_forward.1} parent=11 // pred_check_branch
        %142 = sbr.rel (%p140) target = $region16
      $region15: #{end2end_forward.1} parent=11 // pred_region
        _
      $region16: #{end2end_forward.1} parent=11 // pred_fallthru
        _
      // Predicated region
      $region17: #{end2end_forward.1} parent=11 // pred_check
        %p143 = pneg %p78
      $region18: #{end2end_forward.1} parent=11 // pred_check_branch
        %145 = sbr.rel (%p143) target = $region20
      $region19: #{end2end_forward.1} parent=11 // pred_region
        _
      $region20: #{end2end_forward.1} parent=11 // pred_fallthru
        _
      // Predicated region
      $region21: #{end2end_forward.1} parent=11 // pred_check
        %p146 = pneg %p99
      $region22: #{end2end_forward.1} parent=11 // pred_check_branch
        %148 = sbr.rel (%p146) target = $region24
      $region23: #{end2end_forward.1} parent=11 // pred_region
        _
      $region24: #{end2end_forward.1} parent=11 // pred_fallthru
        _
    $region12: #{end2end_forward.1} parent=5 // pred_fallthru
      _
    %p149 = scmp.lt.s32.totalorder %s10, 2
    // Predicated region
    $region25: #{end2end_forward.1} parent=5 // pred_check
      %p150 = pneg %p149
    $region26: #{end2end_forward.1} parent=5 // pred_check_branch
      %152 = sbr.rel (%p150) target = $region28
    $region27: #{end2end_forward.1} parent=5 // pred_region
      // Predicated region
      $region29: #{end2end_forward.1} parent=27 // pred_check
        %p153 = pneg %p30
      $region30: #{end2end_forward.1} parent=27 // pred_check_branch
        %155 = sbr.rel (%p153) target = $region32
      $region31: #{end2end_forward.1} parent=27 // pred_region
        %s156 = smul.u32 2, %s10
        %p157 = scmp.lt.s32.totalorder %s156, 3
        %s158 = scalar_select %p157, %s156, 3
        %s159 = smul.addr %s158, 2
        %s160 = smul.addr %s159, 4
        %s161 = scalar_lea.vmem %s0, %s160
        %s162 = smul.u32 2, %s10
      $region32: #{end2end_forward.1} parent=27 // pred_fallthru
        _
    $region28: #{end2end_forward.1} parent=5 // pred_fallthru
      _
    %p163 = scmp.le.s32.totalorder 1, %s10
    %p164 = scmp.lt.s32.totalorder %s10, 3
    %p165 = pnand %p163, %p164
    %p166 = pneg %p165
    // Predicated region
    $region33: #{end2end_forward.1} parent=5 // pred_check
      _
    $region34: #{end2end_forward.1} parent=5 // pred_check_branch
      %168 = sbr.rel (%p165) target = $region36
    $region35: #{end2end_forward.1} parent=5 // pred_region
      %s169 = ssub.s32 %s10, 1
      %s170 = smul.u32 2, %s15
      %p171 = scmp.lt.s32.totalorder %s170, 3
      %s172 = scalar_select %p171, %s170, 3
      %s173 = smul.addr %s172, 2
      %s174 = smul.addr %s173, 4
      %s175 = scalar_lea.vmem %s0, %s174
      %p176 = pneg %p36
      %p177 = pneg %p33
      %p178 = pneg %p57
      %p179 = pneg %p54
      %p180 = pneg %p78
      %p181 = pneg %p75
      %p182 = pneg %p99
      %p183 = pneg %p96
      %p184 = pneg %p125
      %p185 = pneg %p122
      %s186 = smul.u32 2, %s15
      %p187 = scmp.lt.s32.totalorder %s186, 3
      %s188 = scalar_select %p187, %s186, 3
      %s189 = smul.addr %s188, 2
      %s190 = smul.addr %s189, 4
      %s191 = scalar_lea.vmem %s4, %s190
      %s192 = smul.u32 2, %s15
      %p193 = scmp.lt.s32.totalorder %s192, 3
      %s194 = scalar_select %p193, %s192, 3
      %s195 = smul.addr %s194, 2
      %s196 = smul.addr %s195, 4
      %s197 = scalar_lea.vmem %s0, %s196
      %s198 = smul.u32 2, %s15
      %s199 = smul.u32 2, %s15
      %p200 = scmp.lt.s32.totalorder %s199, 3
      %s201 = scalar_select %p200, %s199, 3
      %s202 = smul.addr %s201, 2
      %s203 = smul.addr %s202, 4
      %s204 = scalar_lea.vmem %s4, %s203
      %s205 = smul.u32 2, %s15
      %207 = vst [vmem:[#allocation2] sm:$0xff] 0.0
      %208 = vst [vmem:[#allocation2 + $0x8] sm:$0xff] 0.0
      %209 = vst [vmem:[#allocation2 + $0x10] sm:$0xff] 0.0
      %210 = vst [vmem:[#allocation2 + $0x18] sm:$0xff] 0.0
      %211 = vst [vmem:[#allocation2 + $0x20] sm:$0xff] 0.0
      %212 = vst [vmem:[#allocation2 + $0x28] sm:$0xff] 0.0
      %213 = vst [vmem:[#allocation2 + $0x30] sm:$0xff] 0.0
      %214 = vst [vmem:[#allocation2 + $0x38] sm:$0xff] 0.0
      %215 = vst [vmem:[#allocation2 + $0x40] sm:$0xff] 0.0
      %216 = vst [vmem:[#allocation2 + $0x48] sm:$0xff] 0.0
      %217 = vst [vmem:[#allocation2 + $0x50] sm:$0xff] 0.0
      %218 = vst [vmem:[#allocation2 + $0x58] sm:$0xff] 0.0
      %219 = vst [vmem:[#allocation2 + $0x60] sm:$0xff] 0.0
      %220 = vst [vmem:[#allocation2 + $0x68] sm:$0xff] 0.0
      %221 = vst [vmem:[#allocation2 + $0x70] sm:$0xff] 0.0
      %222 = vst [vmem:[#allocation2 + $0x78] sm:$0xff] 0.0
      %v223 = vld [vmem:[%s197] sm:$0x77]
      %225 = vst [vmem:[#allocation1] ss:$2 sm:$0xff] %v223
      %v226 = vld.sshfl [vmem:[#allocation1] sm:$0xff pattern:$0x75316420]
      %v227 = vld.sshfl [vmem:[#allocation1 + $0x8] sm:$0xff pattern:$0x75316420]
      %230 = vst [vmem:[#allocation2 + $0x8] sm:$0x7] %v226
      %231 = vst [vmem:[#allocation2 + $0x10] sm:$0x7] %v227
      %s232 = scalar_lea.vmem %s197, 8
      %v233 = vld [vmem:[%s232] sm:$0x77]
      %235 = vst [vmem:[#allocation1] ss:$2 sm:$0xff] %v233
      %v236 = vld.sshfl [vmem:[#allocation1] sm:$0xff pattern:$0x75316420]
      %v237 = vld.sshfl [vmem:[#allocation1 + $0x8] sm:$0xff pattern:$0x75316420]
      %240 = vst [vmem:[#allocation2 + $0x28] sm:$0x7] %v236
      %241 = vst [vmem:[#allocation2 + $0x30] sm:$0x7] %v237
      %v242 = vld [vmem:[%s1] ss:$2 sm:$0x3]
      %v244 = vperm.slane %v242, 0
      %v245 = vperm.slane %v242, 1
      %s246 = scalar_lea.vmem %s1, 1
      %v247 = vld [vmem:[%s246] ss:$2 sm:$0x3]
      %v249 = vperm.slane %v247, 0
      %v250 = vperm.slane %v247, 1
      %v251 = vld [vmem:[#allocation2] sm:$0xff]
      %v252 = vld [vmem:[#allocation2 + $0x8] sm:$0xff]
      %v253 = vld [vmem:[#allocation2 + $0x10] sm:$0xff]
      %v254 = vld [vmem:[#allocation2 + $0x40] sm:$0xff]
      %v255 = vld [vmem:[#allocation2 + $0x48] sm:$0xff]
      %v256 = vld [vmem:[#allocation2 + $0x50] sm:$0xff]
      %257 = vrot.lane.b32.xlu0 %v244, 111
      %v258 = vpop.permute.xlu0 %257
      %259 = vrot.lane.b32.xlu0 %v245, 111
      %v260 = vpop.permute.xlu0 %259
      %vm261 = vcmask 908288
      %v262 = vsel %vm261, %v258, %v260
      %v266 = vmul.f32 %v251, %v258
      %v267 = vmul.f32 %v252, %v262
      %v268 = vmul.f32 %v253, %v260
      %v269 = vmul.f32 %v254, %v258
      %v270 = vmul.f32 %v255, %v262
      %v271 = vmul.f32 %v256, %v260
      %v272 = vpack.c.bf16 %v267, %v266
      %v273 = vpack.c.bf16 %v268, %v268
      %v274 = vpack.c.bf16 %v270, %v269
      %v275 = vpack.c.bf16 %v271, %v271
      %280 = vrot.lane.b32.xlu0 %v272, 17
      %v281 = vpop.permute.xlu0 %280
      %282 = vrot.lane.b32.xlu0 %v273, 17
      %v283 = vpop.permute.xlu0 %282
      %284 = vrot.lane.b32.xlu0 %v274, 17
      %v285 = vpop.permute.xlu0 %284
      %286 = vrot.lane.b32.xlu0 %v275, 17
      %v287 = vpop.permute.xlu0 %286
      %v288 = vrot.slane %v281, 4
      %v289 = vrot.slane %v283, 4
      %v290 = vrot.slane %v285, 4
      %v291 = vrot.slane %v287, 4
      %vm292 = vcmask 1043456
      %v293 = vsel %vm292, %v288, %v289
      %vm294 = vcmask 138240
      %v295 = vsel %vm294, %v281, %v293
      %v296 = vsel %vm292, %v290, %v291
      %v297 = vsel %vm294, %v285, %v296
      %300 = vst [vmem:[#allocation3] sm:$0xff] %v295
      %301 = vst [vmem:[#allocation3 + $0x10] sm:$0xff] %v297
      %v302 = vld [vmem:[#allocation2] sm:$0xff]
      %v303 = vld [vmem:[#allocation2 + $0x8] sm:$0xff]
      %v304 = vld [vmem:[#allocation2 + $0x10] sm:$0xff]
      %v305 = vld [vmem:[#allocation2 + $0x40] sm:$0xff]
      %v306 = vld [vmem:[#allocation2 + $0x48] sm:$0xff]
      %v307 = vld [vmem:[#allocation2 + $0x50] sm:$0xff]
      %v308 = vpack.c.bf16 %v303, %v302
      %v309 = vpack.c.bf16 %v304, %v304
      %v310 = vpack.c.bf16 %v306, %v305
      %v311 = vpack.c.bf16 %v307, %v307
      %316 = vrot.lane.b32.xlu0 %v308, 16
      %v317 = vpop.permute.xlu0 %316
      %318 = vrot.lane.b32.xlu0 %v309, 16
      %v319 = vpop.permute.xlu0 %318
      %320 = vrot.lane.b32.xlu0 %v310, 16
      %v321 = vpop.permute.xlu0 %320
      %322 = vrot.lane.b32.xlu0 %v311, 16
      %v323 = vpop.permute.xlu0 %322
      %v324 = vrot.slane %v317, 4
      %v325 = vrot.slane %v319, 4
      %v326 = vrot.slane %v321, 4
      %v327 = vrot.slane %v323, 4
      %v328 = vsel %vm292, %v324, %v325
      %vm329 = vcmask 130048
      %v330 = vsel %vm329, %v317, %v328
      %v331 = vsel %vm292, %v326, %v327
      %v332 = vsel %vm329, %v321, %v331
      %335 = vst [vmem:[#allocation3 + $0x20] sm:$0xff] %v330
      %336 = vst [vmem:[#allocation3 + $0x30] sm:$0xff] %v332
      %v337 = vld [vmem:[#allocation2] sm:$0xff]
      %v338 = vld [vmem:[#allocation2 + $0x8] sm:$0xff]
      %v339 = vld [vmem:[#allocation2 + $0x10] sm:$0xff]
      %v340 = vld [vmem:[#allocation2 + $0x40] sm:$0xff]
      %v341 = vld [vmem:[#allocation2 + $0x48] sm:$0xff]
      %v342 = vld [vmem:[#allocation2 + $0x50] sm:$0xff]
      %343 = vrot.lane.b32.xlu0 %v249, 113
      %v344 = vpop.permute.xlu0 %343
      %345 = vrot.lane.b32.xlu0 %v250, 113
      %v346 = vpop.permute.xlu0 %345
      %vm347 = vcmask 924672
      %v348 = vsel %vm347, %v344, %v346
      %v352 = vmul.f32 %v337, %v344
      %v353 = vmul.f32 %v338, %v348
      %v354 = vmul.f32 %v339, %v346
      %v355 = vmul.f32 %v340, %v344
      %v356 = vmul.f32 %v341, %v348
      %v357 = vmul.f32 %v342, %v346
      %v358 = vpack.c.bf16 %v353, %v352
      %v359 = vpack.c.bf16 %v354, %v354
      %v360 = vpack.c.bf16 %v356, %v355
      %v361 = vpack.c.bf16 %v357, %v357
      %366 = vrot.lane.b32.xlu0 %v358, 15
      %v367 = vpop.permute.xlu0 %366
      %368 = vrot.lane.b32.xlu0 %v359, 15
      %v369 = vpop.permute.xlu0 %368
      %370 = vrot.lane.b32.xlu0 %v360, 15
      %v371 = vpop.permute.xlu0 %370
      %372 = vrot.lane.b32.xlu0 %v361, 15
      %v373 = vpop.permute.xlu0 %372
      %v374 = vrot.slane %v367, 4
      %v375 = vrot.slane %v369, 4
      %v376 = vrot.slane %v371, 4
      %v377 = vrot.slane %v373, 4
      %v378 = vsel %vm292, %v374, %v375
      %vm379 = vcmask 121856
      %v380 = vsel %vm379, %v367, %v378
      %v381 = vsel %vm292, %v376, %v377
      %v382 = vsel %vm379, %v371, %v381
      %385 = vst [vmem:[#allocation3 + $0x40] sm:$0xff] %v380
      %386 = vst [vmem:[#allocation3 + $0x50] sm:$0xff] %v382
      %v387 = vld [vmem:[#allocation2] sm:$0xff]
      %v388 = vld [vmem:[#allocation2 + $0x8] sm:$0xff]
      %v389 = vld [vmem:[#allocation2 + $0x10] sm:$0xff]
      %v390 = vld [vmem:[#allocation2 + $0x40] sm:$0xff]
      %v391 = vld [vmem:[#allocation2 + $0x48] sm:$0xff]
      %v392 = vld [vmem:[#allocation2 + $0x50] sm:$0xff]
      %393 = vrot.lane.b32.xlu0 %v244, 127
      %v394 = vpop.permute.xlu0 %393
      %395 = vrot.lane.b32.xlu0 %v245, 127
      %v396 = vpop.permute.xlu0 %395
      %vm397 = vcmask 1039360
      %v398 = vsel %vm397, %v394, %v396
      %v402 = vmul.f32 %v387, %v394
      %v403 = vmul.f32 %v388, %v398
      %v404 = vmul.f32 %v389, %v396
      %v405 = vmul.f32 %v390, %v394
      %v406 = vmul.f32 %v391, %v398
      %v407 = vmul.f32 %v392, %v396
      %v408 = vpack.c.bf16 %v403, %v402
      %v409 = vpack.c.bf16 %v404, %v404
      %v410 = vpack.c.bf16 %v406, %v405
      %v411 = vpack.c.bf16 %v407, %v407
      %416 = vrot.lane.b32.xlu0 %v408, 1
      %v417 = vpop.permute.xlu0 %416
      %418 = vrot.lane.b32.xlu0 %v409, 1
      %v419 = vpop.permute.xlu0 %418
      %420 = vrot.lane.b32.xlu0 %v410, 1
      %v421 = vpop.permute.xlu0 %420
      %422 = vrot.lane.b32.xlu0 %v411, 1
      %v423 = vpop.permute.xlu0 %422
      %v424 = vrot.slane %v417, 4
      %v425 = vrot.slane %v419, 4
      %v426 = vrot.slane %v421, 4
      %v427 = vrot.slane %v423, 4
      %v428 = vsel %vm292, %v424, %v425
      %vm429 = vcmask 7168
      %v430 = vsel %vm429, %v417, %v428
      %v431 = vsel %vm292, %v426, %v427
      %v432 = vsel %vm429, %v421, %v431
      %435 = vst [vmem:[#allocation3 + $0x60] sm:$0xff] %v430
      %436 = vst [vmem:[#allocation3 + $0x70] sm:$0xff] %v432
      %v437 = vld [vmem:[#allocation2 + $0x8] sm:$0xff]
      %v438 = vld [vmem:[#allocation2 + $0x10] sm:$0xff]
      %v439 = vld [vmem:[#allocation2 + $0x48] sm:$0xff]
      %v440 = vld [vmem:[#allocation2 + $0x50] sm:$0xff]
      %v441 = vpack.c.bf16 %v438, %v437
      %v442 = vpack.c.bf16 %v440, %v439
      %443 = vst [vmem:[#allocation3 + $0x80] sm:$0xff] %v441
      %444 = vst [vmem:[#allocation3 + $0x90] sm:$0xff] %v442
      %v445 = vld [vmem:[#allocation2 + $0x8] sm:$0xff]
      %v446 = vld [vmem:[#allocation2 + $0x10] sm:$0xff]
      %v447 = vld [vmem:[#allocation2 + $0x18] sm:$0xff]
      %v448 = vld [vmem:[#allocation2 + $0x48] sm:$0xff]
      %v449 = vld [vmem:[#allocation2 + $0x50] sm:$0xff]
      %v450 = vld [vmem:[#allocation2 + $0x58] sm:$0xff]
      %451 = vrot.lane.b32.xlu0 %v249, 1
      %v452 = vpop.permute.xlu0 %451
      %453 = vrot.lane.b32.xlu0 %v250, 1
      %v454 = vpop.permute.xlu0 %453
      %vm455 = vcmask 7168
      %v456 = vsel %vm455, %v452, %v454
      %v460 = vmul.f32 %v445, %v452
      %v461 = vmul.f32 %v446, %v456
      %v462 = vmul.f32 %v447, %v454
      %v463 = vmul.f32 %v448, %v452
      %v464 = vmul.f32 %v449, %v456
      %v465 = vmul.f32 %v450, %v454
      %v466 = vpack.c.bf16 %v461, %v460
      %v467 = vpack.c.bf16 %v462, %v462
      %v468 = vpack.c.bf16 %v464, %v463
      %v469 = vpack.c.bf16 %v465, %v465
      %474 = vrot.lane.b32.xlu0 %v466, 127
      %v475 = vpop.permute.xlu0 %474
      %476 = vrot.lane.b32.xlu0 %v467, 127
      %v477 = vpop.permute.xlu0 %476
      %478 = vrot.lane.b32.xlu0 %v468, 127
      %v479 = vpop.permute.xlu0 %478
      %480 = vrot.lane.b32.xlu0 %v469, 127
      %v481 = vpop.permute.xlu0 %480
      %v482 = vrot.slane %v475, 4
      %v483 = vrot.slane %v477, 4
      %v484 = vrot.slane %v479, 4
      %v485 = vrot.slane %v481, 4
      %v486 = vsel %vm292, %v482, %v483
      %vm487 = vcmask 1039360
      %v488 = vsel %vm487, %v475, %v486
      %v489 = vsel %vm292, %v484, %v485
      %v490 = vsel %vm487, %v479, %v489
      %493 = vst [vmem:[#allocation3 + $0xa0] sm:$0xff] %v488
      %494 = vst [vmem:[#allocation3 + $0xb0] sm:$0xff] %v490
      %v495 = vld [vmem:[#allocation2 + $0x8] sm:$0xff]
      %v496 = vld [vmem:[#allocation2 + $0x10] sm:$0xff]
      %v497 = vld [vmem:[#allocation2 + $0x18] sm:$0xff]
      %v498 = vld [vmem:[#allocation2 + $0x48] sm:$0xff]
      %v499 = vld [vmem:[#allocation2 + $0x50] sm:$0xff]
      %v500 = vld [vmem:[#allocation2 + $0x58] sm:$0xff]
      %501 = vrot.lane.b32.xlu0 %v244, 15
      %v502 = vpop.permute.xlu0 %501
      %503 = vrot.lane.b32.xlu0 %v245, 15
      %v504 = vpop.permute.xlu0 %503
      %vm505 = vcmask 121856
      %v506 = vsel %vm505, %v502, %v504
      %v510 = vmul.f32 %v495, %v502
      %v511 = vmul.f32 %v496, %v506
      %v512 = vmul.f32 %v497, %v504
      %v513 = vmul.f32 %v498, %v502
      %v514 = vmul.f32 %v499, %v506
      %v515 = vmul.f32 %v500, %v504
      %v516 = vpack.c.bf16 %v511, %v510
      %v517 = vpack.c.bf16 %v512, %v512
      %v518 = vpack.c.bf16 %v514, %v513
      %v519 = vpack.c.bf16 %v515, %v515
      %524 = vrot.lane.b32.xlu0 %v516, 113
      %v525 = vpop.permute.xlu0 %524
      %526 = vrot.lane.b32.xlu0 %v517, 113
      %v527 = vpop.permute.xlu0 %526
      %528 = vrot.lane.b32.xlu0 %v518, 113
      %v529 = vpop.permute.xlu0 %528
      %530 = vrot.lane.b32.xlu0 %v519, 113
      %v531 = vpop.permute.xlu0 %530
      %v532 = vrot.slane %v525, 4
      %v533 = vrot.slane %v527, 4
      %v534 = vrot.slane %v529, 4
      %v535 = vrot.slane %v531, 4
      %v536 = vsel %vm292, %v532, %v533
      %vm537 = vcmask 924672
      %v538 = vsel %vm537, %v525, %v536
      %v539 = vsel %vm292, %v534, %v535
      %v540 = vsel %vm537, %v529, %v539
      %543 = vst [vmem:[#allocation3 + $0xc0] sm:$0xff] %v538
      %544 = vst [vmem:[#allocation3 + $0xd0] sm:$0xff] %v540
      %v545 = vld [vmem:[#allocation2 + $0x8] sm:$0xff]
      %v546 = vld [vmem:[#allocation2 + $0x10] sm:$0xff]
      %v547 = vld [vmem:[#allocation2 + $0x18] sm:$0xff]
      %v548 = vld [vmem:[#allocation2 + $0x48] sm:$0xff]
      %v549 = vld [vmem:[#allocation2 + $0x50] sm:$0xff]
      %v550 = vld [vmem:[#allocation2 + $0x58] sm:$0xff]
      %v551 = vpack.c.bf16 %v546, %v545
      %v552 = vpack.c.bf16 %v547, %v547
      %v553 = vpack.c.bf16 %v549, %v548
      %v554 = vpack.c.bf16 %v550, %v550
      %559 = vrot.lane.b32.xlu0 %v551, 112
      %v560 = vpop.permute.xlu0 %559
      %561 = vrot.lane.b32.xlu0 %v552, 112
      %v562 = vpop.permute.xlu0 %561
      %563 = vrot.lane.b32.xlu0 %v553, 112
      %v564 = vpop.permute.xlu0 %563
      %565 = vrot.lane.b32.xlu0 %v554, 112
      %v566 = vpop.permute.xlu0 %565
      %v567 = vrot.slane %v560, 4
      %v568 = vrot.slane %v562, 4
      %v569 = vrot.slane %v564, 4
      %v570 = vrot.slane %v566, 4
      %v571 = vsel %vm292, %v567, %v568
      %vm572 = vcmask 916480
      %v573 = vsel %vm572, %v560, %v571
      %v574 = vsel %vm292, %v569, %v570
      %v575 = vsel %vm572, %v564, %v574
      %578 = vst [vmem:[#allocation3 + $0xe0] sm:$0xff] %v573
      %579 = vst [vmem:[#allocation3 + $0xf0] sm:$0xff] %v575
      %v580 = vld [vmem:[#allocation2 + $0x8] sm:$0xff]
      %v581 = vld [vmem:[#allocation2 + $0x10] sm:$0xff]
      %v582 = vld [vmem:[#allocation2 + $0x18] sm:$0xff]
      %v583 = vld [vmem:[#allocation2 + $0x48] sm:$0xff]
      %v584 = vld [vmem:[#allocation2 + $0x50] sm:$0xff]
      %v585 = vld [vmem:[#allocation2 + $0x58] sm:$0xff]
      %586 = vrot.lane.b32.xlu0 %v249, 17
      %v587 = vpop.permute.xlu0 %586
      %588 = vrot.lane.b32.xlu0 %v250, 17
      %v589 = vpop.permute.xlu0 %588
      %vm590 = vcmask 138240
      %v591 = vsel %vm590, %v587, %v589
      %v595 = vmul.f32 %v580, %v587
      %v596 = vmul.f32 %v581, %v591
      %v597 = vmul.f32 %v582, %v589
      %v598 = vmul.f32 %v583, %v587
      %v599 = vmul.f32 %v584, %v591
      %v600 = vmul.f32 %v585, %v589
      %v601 = vpack.c.bf16 %v596, %v595
      %v602 = vpack.c.bf16 %v597, %v597
      %v603 = vpack.c.bf16 %v599, %v598
      %v604 = vpack.c.bf16 %v600, %v600
      %609 = vrot.lane.b32.xlu0 %v601, 111
      %v610 = vpop.permute.xlu0 %609
      %611 = vrot.lane.b32.xlu0 %v602, 111
      %v612 = vpop.permute.xlu0 %611
      %613 = vrot.lane.b32.xlu0 %v603, 111
      %v614 = vpop.permute.xlu0 %613
      %615 = vrot.lane.b32.xlu0 %v604, 111
      %v616 = vpop.permute.xlu0 %615
      %v617 = vrot.slane %v610, 4
      %v618 = vrot.slane %v612, 4
      %v619 = vrot.slane %v614, 4
      %v620 = vrot.slane %v616, 4
      %v621 = vsel %vm292, %v617, %v618
      %vm622 = vcmask 908288
      %v623 = vsel %vm622, %v610, %v621
      %v624 = vsel %vm292, %v619, %v620
      %v625 = vsel %vm622, %v614, %v624
      %628 = vst [vmem:[#allocation3 + $0x100] sm:$0xff] %v623
      %629 = vst [vmem:[#allocation3 + $0x110] sm:$0xff] %v625
      %v630 = vld [vmem:[#allocation2 + $0x20] sm:$0xff]
      %v631 = vld [vmem:[#allocation2 + $0x28] sm:$0xff]
      %v632 = vld [vmem:[#allocation2 + $0x30] sm:$0xff]
      %v633 = vld [vmem:[#allocation2 + $0x60] sm:$0xff]
      %v634 = vld [vmem:[#allocation2 + $0x68] sm:$0xff]
      %v635 = vld [vmem:[#allocation2 + $0x70] sm:$0xff]
      %v636 = vmul.f32 %v630, %v258
      %v637 = vmul.f32 %v631, %v262
      %v638 = vmul.f32 %v632, %v260
      %v639 = vmul.f32 %v633, %v258
      %v640 = vmul.f32 %v634, %v262
      %v641 = vmul.f32 %v635, %v260
      %v642 = vpack.c.bf16 %v637, %v636
      %v643 = vpack.c.bf16 %v638, %v638
      %v644 = vpack.c.bf16 %v640, %v639
      %v645 = vpack.c.bf16 %v641, %v641
      %650 = vrot.lane.b32.xlu0 %v642, 17
      %v651 = vpop.permute.xlu0 %650
      %652 = vrot.lane.b32.xlu0 %v643, 17
      %v653 = vpop.permute.xlu0 %652
      %654 = vrot.lane.b32.xlu0 %v644, 17
      %v655 = vpop.permute.xlu0 %654
      %656 = vrot.lane.b32.xlu0 %v645, 17
      %v657 = vpop.permute.xlu0 %656
      %v658 = vrot.slane %v651, 4
      %v659 = vrot.slane %v653, 4
      %v660 = vrot.slane %v655, 4
      %v661 = vrot.slane %v657, 4
      %v662 = vsel %vm292, %v658, %v659
      %v663 = vsel %vm294, %v651, %v662
      %v664 = vsel %vm292, %v660, %v661
      %v665 = vsel %vm294, %v655, %v664
      %668 = vst [vmem:[#allocation3 + $0x8] sm:$0xff] %v663
      %669 = vst [vmem:[#allocation3 + $0x18] sm:$0xff] %v665
      %v670 = vld [vmem:[#allocation2 + $0x20] sm:$0xff]
      %v671 = vld [vmem:[#allocation2 + $0x28] sm:$0xff]
      %v672 = vld [vmem:[#allocation2 + $0x30] sm:$0xff]
      %v673 = vld [vmem:[#allocation2 + $0x60] sm:$0xff]
      %v674 = vld [vmem:[#allocation2 + $0x68] sm:$0xff]
      %v675 = vld [vmem:[#allocation2 + $0x70] sm:$0xff]
      %v676 = vpack.c.bf16 %v671, %v670
      %v677 = vpack.c.bf16 %v672, %v672
      %v678 = vpack.c.bf16 %v674, %v673
      %v679 = vpack.c.bf16 %v675, %v675
      %684 = vrot.lane.b32.xlu0 %v676, 16
      %v685 = vpop.permute.xlu0 %684
      %686 = vrot.lane.b32.xlu0 %v677, 16
      %v687 = vpop.permute.xlu0 %686
      %688 = vrot.lane.b32.xlu0 %v678, 16
      %v689 = vpop.permute.xlu0 %688
      %690 = vrot.lane.b32.xlu0 %v679, 16
      %v691 = vpop.permute.xlu0 %690
      %v692 = vrot.slane %v685, 4
      %v693 = vrot.slane %v687, 4
      %v694 = vrot.slane %v689, 4
      %v695 = vrot.slane %v691, 4
      %v696 = vsel %vm292, %v692, %v693
      %v697 = vsel %vm329, %v685, %v696
      %v698 = vsel %vm292, %v694, %v695
      %v699 = vsel %vm329, %v689, %v698
      %702 = vst [vmem:[#allocation3 + $0x28] sm:$0xff] %v697
      %703 = vst [vmem:[#allocation3 + $0x38] sm:$0xff] %v699
      %v704 = vld [vmem:[#allocation2 + $0x20] sm:$0xff]
      %v705 = vld [vmem:[#allocation2 + $0x28] sm:$0xff]
      %v706 = vld [vmem:[#allocation2 + $0x30] sm:$0xff]
      %v707 = vld [vmem:[#allocation2 + $0x60] sm:$0xff]
      %v708 = vld [vmem:[#allocation2 + $0x68] sm:$0xff]
      %v709 = vld [vmem:[#allocation2 + $0x70] sm:$0xff]
      %v710 = vmul.f32 %v704, %v344
      %v711 = vmul.f32 %v705, %v348
      %v712 = vmul.f32 %v706, %v346
      %v713 = vmul.f32 %v707, %v344
      %v714 = vmul.f32 %v708, %v348
      %v715 = vmul.f32 %v709, %v346
      %v716 = vpack.c.bf16 %v711, %v710
      %v717 = vpack.c.bf16 %v712, %v712
      %v718 = vpack.c.bf16 %v714, %v713
      %v719 = vpack.c.bf16 %v715, %v715
      %724 = vrot.lane.b32.xlu0 %v716, 15
      %v725 = vpop.permute.xlu0 %724
      %726 = vrot.lane.b32.xlu0 %v717, 15
      %v727 = vpop.permute.xlu0 %726
      %728 = vrot.lane.b32.xlu0 %v718, 15
      %v729 = vpop.permute.xlu0 %728
      %730 = vrot.lane.b32.xlu0 %v719, 15
      %v731 = vpop.permute.xlu0 %730
      %v732 = vrot.slane %v725, 4
      %v733 = vrot.slane %v727, 4
      %v734 = vrot.slane %v729, 4
      %v735 = vrot.slane %v731, 4
      %v736 = vsel %vm292, %v732, %v733
      %v737 = vsel %vm379, %v725, %v736
      %v738 = vsel %vm292, %v734, %v735
      %v739 = vsel %vm379, %v729, %v738
      %742 = vst [vmem:[#allocation3 + $0x48] sm:$0xff] %v737
      %743 = vst [vmem:[#allocation3 + $0x58] sm:$0xff] %v739
      %v744 = vld [vmem:[#allocation2 + $0x20] sm:$0xff]
      %v745 = vld [vmem:[#allocation2 + $0x28] sm:$0xff]
      %v746 = vld [vmem:[#allocation2 + $0x30] sm:$0xff]
      %v747 = vld [vmem:[#allocation2 + $0x60] sm:$0xff]
      %v748 = vld [vmem:[#allocation2 + $0x68] sm:$0xff]
      %v749 = vld [vmem:[#allocation2 + $0x70] sm:$0xff]
      %v750 = vmul.f32 %v744, %v394
      %v751 = vmul.f32 %v745, %v398
      %v752 = vmul.f32 %v746, %v396
      %v753 = vmul.f32 %v747, %v394
      %v754 = vmul.f32 %v748, %v398
      %v755 = vmul.f32 %v749, %v396
      %v756 = vpack.c.bf16 %v751, %v750
      %v757 = vpack.c.bf16 %v752, %v752
      %v758 = vpack.c.bf16 %v754, %v753
      %v759 = vpack.c.bf16 %v755, %v755
      %764 = vrot.lane.b32.xlu0 %v756, 1
      %v765 = vpop.permute.xlu0 %764
      %766 = vrot.lane.b32.xlu0 %v757, 1
      %v767 = vpop.permute.xlu0 %766
      %768 = vrot.lane.b32.xlu0 %v758, 1
      %v769 = vpop.permute.xlu0 %768
      %770 = vrot.lane.b32.xlu0 %v759, 1
      %v771 = vpop.permute.xlu0 %770
      %v772 = vrot.slane %v765, 4
      %v773 = vrot.slane %v767, 4
      %v774 = vrot.slane %v769, 4
      %v775 = vrot.slane %v771, 4
      %v776 = vsel %vm292, %v772, %v773
      %v777 = vsel %vm429, %v765, %v776
      %v778 = vsel %vm292, %v774, %v775
      %v779 = vsel %vm429, %v769, %v778
      %782 = vst [vmem:[#allocation3 + $0x68] sm:$0xff] %v777
      %783 = vst [vmem:[#allocation3 + $0x78] sm:$0xff] %v779
      %v784 = vld [vmem:[#allocation2 + $0x28] sm:$0xff]
      %v785 = vld [vmem:[#allocation2 + $0x30] sm:$0xff]
      %v786 = vld [vmem:[#allocation2 + $0x68] sm:$0xff]
      %v787 = vld [vmem:[#allocation2 + $0x70] sm:$0xff]
      %v788 = vpack.c.bf16 %v785, %v784
      %v789 = vpack.c.bf16 %v787, %v786
      %790 = vst [vmem:[#allocation3 + $0x88] sm:$0xff] %v788
      %791 = vst [vmem:[#allocation3 + $0x98] sm:$0xff] %v789
      %v792 = vld [vmem:[#allocation2 + $0x28] sm:$0xff]
      %v793 = vld [vmem:[#allocation2 + $0x30] sm:$0xff]
      %v794 = vld [vmem:[#allocation2 + $0x38] sm:$0xff]
      %v795 = vld [vmem:[#allocation2 + $0x68] sm:$0xff]
      %v796 = vld [vmem:[#allocation2 + $0x70] sm:$0xff]
      %v797 = vld [vmem:[#allocation2 + $0x78] sm:$0xff]
      %v798 = vmul.f32 %v792, %v452
      %v799 = vmul.f32 %v793, %v456
      %v800 = vmul.f32 %v794, %v454
      %v801 = vmul.f32 %v795, %v452
      %v802 = vmul.f32 %v796, %v456
      %v803 = vmul.f32 %v797, %v454
      %v804 = vpack.c.bf16 %v799, %v798
      %v805 = vpack.c.bf16 %v800, %v800
      %v806 = vpack.c.bf16 %v802, %v801
      %v807 = vpack.c.bf16 %v803, %v803
      %812 = vrot.lane.b32.xlu0 %v804, 127
      %v813 = vpop.permute.xlu0 %812
      %814 = vrot.lane.b32.xlu0 %v805, 127
      %v815 = vpop.permute.xlu0 %814
      %816 = vrot.lane.b32.xlu0 %v806, 127
      %v817 = vpop.permute.xlu0 %816
      %818 = vrot.lane.b32.xlu0 %v807, 127
      %v819 = vpop.permute.xlu0 %818
      %v820 = vrot.slane %v813, 4
      %v821 = vrot.slane %v815, 4
      %v822 = vrot.slane %v817, 4
      %v823 = vrot.slane %v819, 4
      %v824 = vsel %vm292, %v820, %v821
      %v825 = vsel %vm487, %v813, %v824
      %v826 = vsel %vm292, %v822, %v823
      %v827 = vsel %vm487, %v817, %v826
      %830 = vst [vmem:[#allocation3 + $0xa8] sm:$0xff] %v825
      %831 = vst [vmem:[#allocation3 + $0xb8] sm:$0xff] %v827
      %v832 = vld [vmem:[#allocation2 + $0x28] sm:$0xff]
      %v833 = vld [vmem:[#allocation2 + $0x30] sm:$0xff]
      %v834 = vld [vmem:[#allocation2 + $0x38] sm:$0xff]
      %v835 = vld [vmem:[#allocation2 + $0x68] sm:$0xff]
      %v836 = vld [vmem:[#allocation2 + $0x70] sm:$0xff]
      %v837 = vld [vmem:[#allocation2 + $0x78] sm:$0xff]
      %v838 = vmul.f32 %v832, %v502
      %v839 = vmul.f32 %v833, %v506
      %v840 = vmul.f32 %v834, %v504
      %v841 = vmul.f32 %v835, %v502
      %v842 = vmul.f32 %v836, %v506
      %v843 = vmul.f32 %v837, %v504
      %v844 = vpack.c.bf16 %v839, %v838
      %v845 = vpack.c.bf16 %v840, %v840
      %v846 = vpack.c.bf16 %v842, %v841
      %v847 = vpack.c.bf16 %v843, %v843
      %852 = vrot.lane.b32.xlu0 %v844, 113
      %v853 = vpop.permute.xlu0 %852
      %854 = vrot.lane.b32.xlu0 %v845, 113
      %v855 = vpop.permute.xlu0 %854
      %856 = vrot.lane.b32.xlu0 %v846, 113
      %v857 = vpop.permute.xlu0 %856
      %858 = vrot.lane.b32.xlu0 %v847, 113
      %v859 = vpop.permute.xlu0 %858
      %v860 = vrot.slane %v853, 4
      %v861 = vrot.slane %v855, 4
      %v862 = vrot.slane %v857, 4
      %v863 = vrot.slane %v859, 4
      %v864 = vsel %vm292, %v860, %v861
      %v865 = vsel %vm537, %v853, %v864
      %v866 = vsel %vm292, %v862, %v863
      %v867 = vsel %vm537, %v857, %v866
      %870 = vst [vmem:[#allocation3 + $0xc8] sm:$0xff] %v865
      %871 = vst [vmem:[#allocation3 + $0xd8] sm:$0xff] %v867
      %v872 = vld [vmem:[#allocation2 + $0x28] sm:$0xff]
      %v873 = vld [vmem:[#allocation2 + $0x30] sm:$0xff]
      %v874 = vld [vmem:[#allocation2 + $0x38] sm:$0xff]
      %v875 = vld [vmem:[#allocation2 + $0x68] sm:$0xff]
      %v876 = vld [vmem:[#allocation2 + $0x70] sm:$0xff]
      %v877 = vld [vmem:[#allocation2 + $0x78] sm:$0xff]
      %v878 = vpack.c.bf16 %v873, %v872
      %v879 = vpack.c.bf16 %v874, %v874
      %v880 = vpack.c.bf16 %v876, %v875
      %v881 = vpack.c.bf16 %v877, %v877
      %886 = vrot.lane.b32.xlu0 %v878, 112
      %v887 = vpop.permute.xlu0 %886
      %888 = vrot.lane.b32.xlu0 %v879, 112
      %v889 = vpop.permute.xlu0 %888
      %890 = vrot.lane.b32.xlu0 %v880, 112
      %v891 = vpop.permute.xlu0 %890
      %892 = vrot.lane.b32.xlu0 %v881, 112
      %v893 = vpop.permute.xlu0 %892
      %v894 = vrot.slane %v887, 4
      %v895 = vrot.slane %v889, 4
      %v896 = vrot.slane %v891, 4
      %v897 = vrot.slane %v893, 4
      %v898 = vsel %vm292, %v894, %v895
      %v899 = vsel %vm572, %v887, %v898
      %v900 = vsel %vm292, %v896, %v897
      %v901 = vsel %vm572, %v891, %v900
      %904 = vst [vmem:[#allocation3 + $0xe8] sm:$0xff] %v899
      %905 = vst [vmem:[#allocation3 + $0xf8] sm:$0xff] %v901
      %v906 = vld [vmem:[#allocation2 + $0x28] sm:$0xff]
      %v907 = vld [vmem:[#allocation2 + $0x30] sm:$0xff]
      %v908 = vld [vmem:[#allocation2 + $0x38] sm:$0xff]
      %v909 = vld [vmem:[#allocation2 + $0x68] sm:$0xff]
      %v910 = vld [vmem:[#allocation2 + $0x70] sm:$0xff]
      %v911 = vld [vmem:[#allocation2 + $0x78] sm:$0xff]
      %v912 = vmul.f32 %v906, %v587
      %v913 = vmul.f32 %v907, %v591
      %v914 = vmul.f32 %v908, %v589
      %v915 = vmul.f32 %v909, %v587
      %v916 = vmul.f32 %v910, %v591
      %v917 = vmul.f32 %v911, %v589
      %v918 = vpack.c.bf16 %v913, %v912
      %v919 = vpack.c.bf16 %v914, %v914
      %v920 = vpack.c.bf16 %v916, %v915
      %v921 = vpack.c.bf16 %v917, %v917
      %926 = vrot.lane.b32.xlu0 %v918, 111
      %v927 = vpop.permute.xlu0 %926
      %928 = vrot.lane.b32.xlu0 %v919, 111
      %v929 = vpop.permute.xlu0 %928
      %930 = vrot.lane.b32.xlu0 %v920, 111
      %v931 = vpop.permute.xlu0 %930
      %932 = vrot.lane.b32.xlu0 %v921, 111
      %v933 = vpop.permute.xlu0 %932
      %v934 = vrot.slane %v927, 4
      %v935 = vrot.slane %v929, 4
      %v936 = vrot.slane %v931, 4
      %v937 = vrot.slane %v933, 4
      %v938 = vsel %vm292, %v934, %v935
      %v939 = vsel %vm622, %v927, %v938
      %v940 = vsel %vm292, %v936, %v937
      %v941 = vsel %vm622, %v931, %v940
      %944 = vst [vmem:[#allocation3 + $0x108] sm:$0xff] %v939
      %945 = vst [vmem:[#allocation3 + $0x118] sm:$0xff] %v941
      %v946 = vld [vmem:[%s2] sm:$0xff]
      %v947 = vld [vmem:[%s2 + $0x8] sm:$0xff]
      %v948 = vld [vmem:[#allocation3] sm:$0xff]
      %v949 = vld [vmem:[#allocation3 + $0x8] sm:$0xff]
      %v950 = vld [vmem:[#allocation3 + $0x10] sm:$0xff]
      %v951 = vld [vmem:[#allocation3 + $0x18] sm:$0xff]
      %v952 = vld [vmem:[#allocation3 + $0x20] sm:$0xff]
      %v953 = vld [vmem:[#allocation3 + $0x28] sm:$0xff]
      %v954 = vld [vmem:[#allocation3 + $0x30] sm:$0xff]
      %v955 = vld [vmem:[#allocation3 + $0x38] sm:$0xff]
      %v956 = vld [vmem:[#allocation3 + $0x40] sm:$0xff]
      %v957 = vld [vmem:[#allocation3 + $0x48] sm:$0xff]
      %v958 = vld [vmem:[#allocation3 + $0x50] sm:$0xff]
      %v959 = vld [vmem:[#allocation3 + $0x58] sm:$0xff]
      %v960 = vld [vmem:[#allocation3 + $0x60] sm:$0xff]
      %v961 = vld [vmem:[#allocation3 + $0x68] sm:$0xff]
      %v962 = vld [vmem:[#allocation3 + $0x70] sm:$0xff]
      %v963 = vld [vmem:[#allocation3 + $0x78] sm:$0xff]
      %v964 = vld [vmem:[#allocation3 + $0x80] sm:$0xff]
      %v965 = vld [vmem:[#allocation3 + $0x88] sm:$0xff]
      %v966 = vld [vmem:[#allocation3 + $0x90] sm:$0xff]
      %v967 = vld [vmem:[#allocation3 + $0x98] sm:$0xff]
      %v968 = vld [vmem:[#allocation3 + $0xa0] sm:$0xff]
      %v969 = vld [vmem:[#allocation3 + $0xa8] sm:$0xff]
      %v970 = vld [vmem:[#allocation3 + $0xb0] sm:$0xff]
      %v971 = vld [vmem:[#allocation3 + $0xb8] sm:$0xff]
      %v972 = vld [vmem:[#allocation3 + $0xc0] sm:$0xff]
      %v973 = vld [vmem:[#allocation3 + $0xc8] sm:$0xff]
      %v974 = vld [vmem:[#allocation3 + $0xd0] sm:$0xff]
      %v975 = vld [vmem:[#allocation3 + $0xd8] sm:$0xff]
      %v976 = vld [vmem:[#allocation3 + $0xe0] sm:$0xff]
      %v977 = vld [vmem:[#allocation3 + $0xe8] sm:$0xff]
      %v978 = vld [vmem:[#allocation3 + $0xf0] sm:$0xff]
      %v979 = vld [vmem:[#allocation3 + $0xf8] sm:$0xff]
      %v980 = vld [vmem:[#allocation3 + $0x100] sm:$0xff]
      %v981 = vld [vmem:[#allocation3 + $0x108] sm:$0xff]
      %v982 = vld [vmem:[#allocation3 + $0x110] sm:$0xff]
      %v983 = vld [vmem:[#allocation3 + $0x118] sm:$0xff]
      %v984 = vld [vmem:[%s3] sm:$0xff]
      %v985 = vld [vmem:[%s3 + $0x8] sm:$0xff]
      %987 = vset.pattern.permute.xlu0 0
      %988 = vperm.xlu0 %987, %v984
      %v989 = vpop.permute.xlu0 %988
      %992 = vset.pattern.permute.xlu0 0
      %993 = vperm.xlu0 %992, %v985
      %v994 = vpop.permute.xlu0 %993
      %v998 = vunpack.c.l.b16 %v946
      %v999 = vunpack.c.h.b16 %v946
      %v1000 = vunpack.c.l.b16 %v947
      %v1001 = vunpack.c.h.b16 %v947
      %v1002 = vpack.c.b16 %v1000, %v998
      %v1003 = vpack.c.b16 %v1001, %v999
      %v1041 = vunpack.c.l.b16 %v948
      %v1042 = vunpack.c.h.b16 %v948
      %v1043 = vunpack.c.l.b16 %v949
      %v1044 = vunpack.c.h.b16 %v949
      %v1045 = vunpack.c.l.b16 %v950
      %v1046 = vunpack.c.h.b16 %v950
      %v1047 = vunpack.c.l.b16 %v951
      %v1048 = vunpack.c.h.b16 %v951
      %v1049 = vunpack.c.l.b16 %v952
      %v1050 = vunpack.c.h.b16 %v952
      %v1051 = vunpack.c.l.b16 %v953
      %v1052 = vunpack.c.h.b16 %v953
      %v1053 = vunpack.c.l.b16 %v954
      %v1054 = vunpack.c.h.b16 %v954
      %v1055 = vunpack.c.l.b16 %v955
      %v1056 = vunpack.c.h.b16 %v955
      %v1057 = vunpack.c.l.b16 %v956
      %v1058 = vunpack.c.h.b16 %v956
      %v1059 = vunpack.c.l.b16 %v957
      %v1060 = vunpack.c.h.b16 %v957
      %v1061 = vunpack.c.l.b16 %v958
      %v1062 = vunpack.c.h.b16 %v958
      %v1063 = vunpack.c.l.b16 %v959
      %v1064 = vunpack.c.h.b16 %v959
      %v1065 = vunpack.c.l.b16 %v960
      %v1066 = vunpack.c.h.b16 %v960
      %v1067 = vunpack.c.l.b16 %v961
      %v1068 = vunpack.c.h.b16 %v961
      %v1069 = vunpack.c.l.b16 %v962
      %v1070 = vunpack.c.h.b16 %v962
      %v1071 = vunpack.c.l.b16 %v963
      %v1072 = vunpack.c.h.b16 %v963
      %v1073 = vunpack.c.l.b16 %v964
      %v1074 = vunpack.c.h.b16 %v964
      %v1075 = vunpack.c.l.b16 %v965
      %v1076 = vunpack.c.h.b16 %v965
      %v1077 = vunpack.c.l.b16 %v966
      %v1078 = vunpack.c.h.b16 %v966
      %v1079 = vunpack.c.l.b16 %v967
      %v1080 = vunpack.c.h.b16 %v967
      %v1081 = vunpack.c.l.b16 %v968
      %v1082 = vunpack.c.h.b16 %v968
      %v1083 = vunpack.c.l.b16 %v969
      %v1084 = vunpack.c.h.b16 %v969
      %v1085 = vunpack.c.l.b16 %v970
      %v1086 = vunpack.c.h.b16 %v970
      %v1087 = vunpack.c.l.b16 %v971
      %v1088 = vunpack.c.h.b16 %v971
      %v1089 = vunpack.c.l.b16 %v972
      %v1090 = vunpack.c.h.b16 %v972
      %v1091 = vunpack.c.l.b16 %v973
      %v1092 = vunpack.c.h.b16 %v973
      %v1093 = vunpack.c.l.b16 %v974
      %v1094 = vunpack.c.h.b16 %v974
      %v1095 = vunpack.c.l.b16 %v975
      %v1096 = vunpack.c.h.b16 %v975
      %v1097 = vunpack.c.l.b16 %v976
      %v1098 = vunpack.c.h.b16 %v976
      %v1099 = vunpack.c.l.b16 %v977
      %v1100 = vunpack.c.h.b16 %v977
      %v1101 = vunpack.c.l.b16 %v978
      %v1102 = vunpack.c.h.b16 %v978
      %v1103 = vunpack.c.l.b16 %v979
      %v1104 = vunpack.c.h.b16 %v979
      %v1105 = vunpack.c.l.b16 %v980
      %v1106 = vunpack.c.h.b16 %v980
      %v1107 = vunpack.c.l.b16 %v981
      %v1108 = vunpack.c.h.b16 %v981
      %v1109 = vunpack.c.l.b16 %v982
      %v1110 = vunpack.c.h.b16 %v982
      %v1111 = vunpack.c.l.b16 %v983
      %v1112 = vunpack.c.h.b16 %v983
      %v1113 = vpack.c.b16 %v1045, %v1041
      %v1114 = vpack.c.b16 %v1046, %v1042
      %v1115 = vpack.c.b16 %v1047, %v1043
      %v1116 = vpack.c.b16 %v1048, %v1044
      %v1117 = vpack.c.b16 %v1053, %v1049
      %v1118 = vpack.c.b16 %v1054, %v1050
      %v1119 = vpack.c.b16 %v1055, %v1051
      %v1120 = vpack.c.b16 %v1056, %v1052
      %v1121 = vpack.c.b16 %v1061, %v1057
      %v1122 = vpack.c.b16 %v1062, %v1058
      %v1123 = vpack.c.b16 %v1063, %v1059
      %v1124 = vpack.c.b16 %v1064, %v1060
      %v1125 = vpack.c.b16 %v1069, %v1065
      %v1126 = vpack.c.b16 %v1070, %v1066
      %v1127 = vpack.c.b16 %v1071, %v1067
      %v1128 = vpack.c.b16 %v1072, %v1068
      %v1129 = vpack.c.b16 %v1077, %v1073
      %v1130 = vpack.c.b16 %v1078, %v1074
      %v1131 = vpack.c.b16 %v1079, %v1075
      %v1132 = vpack.c.b16 %v1080, %v1076
      %v1133 = vpack.c.b16 %v1085, %v1081
      %v1134 = vpack.c.b16 %v1086, %v1082
      %v1135 = vpack.c.b16 %v1087, %v1083
      %v1136 = vpack.c.b16 %v1088, %v1084
      %v1137 = vpack.c.b16 %v1093, %v1089
      %v1138 = vpack.c.b16 %v1094, %v1090
      %v1139 = vpack.c.b16 %v1095, %v1091
      %v1140 = vpack.c.b16 %v1096, %v1092
      %v1141 = vpack.c.b16 %v1101, %v1097
      %v1142 = vpack.c.b16 %v1102, %v1098
      %v1143 = vpack.c.b16 %v1103, %v1099
      %v1144 = vpack.c.b16 %v1104, %v1100
      %v1145 = vpack.c.b16 %v1109, %v1105
      %v1146 = vpack.c.b16 %v1110, %v1106
      %v1147 = vpack.c.b16 %v1111, %v1107
      %v1148 = vpack.c.b16 %v1112, %v1108
      %vm1185 = vcmask 130048
      %v1187 = vsel %vm1185, %v1003, 0
      %1189 = vmatpush.bf16.msra.mxu0 %v1141
      %1190 = vmatpush.bf16.msra.mxu0 %v1137
      %1191 = vmatpush.bf16.msra.mxu0 %v1133
      %1192 = vmatpush.bf16.msra.mxu0 %v1129
      %1193 = vmatpush.bf16.msra.mxu0 %v1125
      %1194 = vmatpush.bf16.msra.mxu0 %v1121
      %1195 = vmatpush.bf16.msra.mxu0 %v1117
      %1196 = vmatpush.bf16.msra.mxu0 %v1113
      %1197 = vmatmul.bf16.gmra.mxu0 %v1002
      %v1198 = vpop.f32.mrf.mxu0
      %v1199 = vadd.f32 %v989, %v1198
      %v1200 = vpop.f32.mrf.mxu0
      %v1201 = vadd.f32 %v994, %v1200
      %1202 = vdwg.mxu0
      %1203 = vmatpush.bf16.msra.mxu0 0
      %1204 = vmatpush.bf16.msra.mxu0 0
      %1205 = vmatpush.bf16.msra.mxu0 0
      %1206 = vmatpush.bf16.msra.mxu0 0
      %1207 = vmatpush.bf16.msra.mxu0 0
      %1208 = vmatpush.bf16.msra.mxu0 0
      %1209 = vmatpush.bf16.msra.mxu0 0
      %1210 = vmatpush.bf16.msra.mxu0 %v1145
      %1211 = vmatmul.bf16.gmra.mxu0 %v1187
      %v1212 = vpop.f32.mrf.mxu0
      %v1213 = vadd.f32 %v1199, %v1212
      %v1214 = vpop.f32.mrf.mxu0
      %v1215 = vadd.f32 %v1201, %v1214
      %1216 = vdwg.mxu0
      %1217 = vmatpush.bf16.msra.mxu0 %v1142
      %1218 = vmatpush.bf16.msra.mxu0 %v1138
      %1219 = vmatpush.bf16.msra.mxu0 %v1134
      %1220 = vmatpush.bf16.msra.mxu0 %v1130
      %1221 = vmatpush.bf16.msra.mxu0 %v1126
      %1222 = vmatpush.bf16.msra.mxu0 %v1122
      %1223 = vmatpush.bf16.msra.mxu0 %v1118
      %1224 = vmatpush.bf16.msra.mxu0 %v1114
      %1225 = vmatmul.bf16.gmra.mxu0 %v1002
      %v1226 = vpop.f32.mrf.mxu0
      %v1227 = vadd.f32 %v989, %v1226
      %v1228 = vpop.f32.mrf.mxu0
      %v1229 = vadd.f32 %v994, %v1228
      %1230 = vdwg.mxu0
      %1231 = vmatpush.bf16.msra.mxu0 0
      %1232 = vmatpush.bf16.msra.mxu0 0
      %1233 = vmatpush.bf16.msra.mxu0 0
      %1234 = vmatpush.bf16.msra.mxu0 0
      %1235 = vmatpush.bf16.msra.mxu0 0
      %1236 = vmatpush.bf16.msra.mxu0 0
      %1237 = vmatpush.bf16.msra.mxu0 0
      %1238 = vmatpush.bf16.msra.mxu0 %v1146
      %1239 = vmatmul.bf16.gmra.mxu0 %v1187
      %v1240 = vpop.f32.mrf.mxu0
      %v1241 = vadd.f32 %v1227, %v1240
      %v1242 = vpop.f32.mrf.mxu0
      %v1243 = vadd.f32 %v1229, %v1242
      %1244 = vdwg.mxu0
      %1245 = vmatpush.bf16.msra.mxu0 %v1143
      %1246 = vmatpush.bf16.msra.mxu0 %v1139
      %1247 = vmatpush.bf16.msra.mxu0 %v1135
      %1248 = vmatpush.bf16.msra.mxu0 %v1131
      %1249 = vmatpush.bf16.msra.mxu0 %v1127
      %1250 = vmatpush.bf16.msra.mxu0 %v1123
      %1251 = vmatpush.bf16.msra.mxu0 %v1119
      %1252 = vmatpush.bf16.msra.mxu0 %v1115
      %1253 = vmatmul.bf16.gmra.mxu0 %v1002
      %v1254 = vpop.f32.mrf.mxu0
      %v1255 = vadd.f32 %v989, %v1254
      %v1256 = vpop.f32.mrf.mxu0
      %v1257 = vadd.f32 %v994, %v1256
      %1258 = vdwg.mxu0
      %1259 = vmatpush.bf16.msra.mxu0 0
      %1260 = vmatpush.bf16.msra.mxu0 0
      %1261 = vmatpush.bf16.msra.mxu0 0
      %1262 = vmatpush.bf16.msra.mxu0 0
      %1263 = vmatpush.bf16.msra.mxu0 0
      %1264 = vmatpush.bf16.msra.mxu0 0
      %1265 = vmatpush.bf16.msra.mxu0 0
      %1266 = vmatpush.bf16.msra.mxu0 %v1147
      %1267 = vmatmul.bf16.gmra.mxu0 %v1187
      %v1268 = vpop.f32.mrf.mxu0
      %v1269 = vadd.f32 %v1255, %v1268
      %v1270 = vpop.f32.mrf.mxu0
      %v1271 = vadd.f32 %v1257, %v1270
      %1272 = vdwg.mxu0
      %1273 = vmatpush.bf16.msra.mxu0 %v1144
      %1274 = vmatpush.bf16.msra.mxu0 %v1140
      %1275 = vmatpush.bf16.msra.mxu0 %v1136
      %1276 = vmatpush.bf16.msra.mxu0 %v1132
      %1277 = vmatpush.bf16.msra.mxu0 %v1128
      %1278 = vmatpush.bf16.msra.mxu0 %v1124
      %1279 = vmatpush.bf16.msra.mxu0 %v1120
      %1280 = vmatpush.bf16.msra.mxu0 %v1116
      %1281 = vmatmul.bf16.gmra.mxu0 %v1002
      %v1282 = vpop.f32.mrf.mxu0
      %v1283 = vadd.f32 %v989, %v1282
      %v1284 = vpop.f32.mrf.mxu0
      %v1285 = vadd.f32 %v994, %v1284
      %1286 = vdwg.mxu0
      %1287 = vmatpush.bf16.msra.mxu0 0
      %1288 = vmatpush.bf16.msra.mxu0 0
      %1289 = vmatpush.bf16.msra.mxu0 0
      %1290 = vmatpush.bf16.msra.mxu0 0
      %1291 = vmatpush.bf16.msra.mxu0 0
      %1292 = vmatpush.bf16.msra.mxu0 0
      %1293 = vmatpush.bf16.msra.mxu0 0
      %1294 = vmatpush.bf16.msra.mxu0 %v1148
      %1295 = vmatmul.bf16.gmra.mxu0 %v1187
      %v1296 = vpop.f32.mrf.mxu0
      %v1297 = vadd.f32 %v1283, %v1296
      %v1298 = vpop.f32.mrf.mxu0
      %v1299 = vadd.f32 %v1285, %v1298
      %1300 = vdwg.mxu0
      %1301 = vst [vmem:[#allocation4] sm:$0xff] %v1213
      %1302 = vst [vmem:[#allocation4 + $0x8] sm:$0xff] %v1241
      %1303 = vst [vmem:[#allocation4 + $0x10] sm:$0xff] %v1269
      %1304 = vst [vmem:[#allocation4 + $0x18] sm:$0xff] %v1297
      %1305 = vst [vmem:[#allocation4 + $0x20] sm:$0xff] %v1215
      %1306 = vst [vmem:[#allocation4 + $0x28] sm:$0xff] %v1243
      %1307 = vst [vmem:[#allocation4 + $0x30] sm:$0xff] %v1271
      %1308 = vst [vmem:[#allocation4 + $0x38] sm:$0xff] %v1299
      %v1309 = vld [vmem:[#allocation4] sm:$0x7]
      %v1310 = vld [vmem:[#allocation4 + $0x8] sm:$0x7]
      %v1313 = vrot.slane %v1310, 4
      %vm1314 = vcmask 1043456
      %v1315 = vsel %vm1314, %v1309, %v1313
      %1317 = vst [vmem:[%s204] sm:$0x77] %v1315
      %v1318 = vld [vmem:[#allocation4 + $0x10] sm:$0x7]
      %v1319 = vld [vmem:[#allocation4 + $0x18] sm:$0x7]
      %v1322 = vrot.slane %v1319, 4
      %v1323 = vsel %vm1314, %v1318, %v1322
      %s1325 = scalar_lea.vmem %s204, 8
      %1326 = vst [vmem:[%s1325] sm:$0x77] %v1323
      %s1327 = smul.u32 2, %s15
      %p1328 = scmp.lt.s32.totalorder %s1327, 3
      %s1329 = scalar_select %p1328, %s1327, 3
      %s1330 = smul.addr %s1329, 2
      %s1331 = smul.addr %s1330, 4
      %s1332 = scalar_lea.vmem %s4, %s1331
      // Predicated region
      $region37: #{end2end_forward.1} parent=35 // pred_check
        %p1333 = pneg %p122
      $region38: #{end2end_forward.1} parent=35 // pred_check_branch
        %1335 = sbr.rel (%p1333) target = $region40
      $region39: #{end2end_forward.1} parent=35 // pred_region
        %s1336 = smul.u32 2, %s15
      $region40: #{end2end_forward.1} parent=35 // pred_fallthru
        _
    $region36: #{end2end_forward.1} parent=5 // pred_fallthru
      _
    %p1337 = scmp.le.s32.totalorder 2, %s10
    // Predicated region
    $region41: #{end2end_forward.1} parent=5 // pred_check
      %p1338 = pneg %p1337
    $region42: #{end2end_forward.1} parent=5 // pred_check_branch
      %1340 = sbr.rel (%p1338) target = $region44
    $region43: #{end2end_forward.1} parent=5 // pred_region
      %s1341 = ssub.s32 %s10, 2
      // Predicated region
      $region45: #{end2end_forward.1} parent=43 // pred_check
        %p1342 = pneg %p128
      $region46: #{end2end_forward.1} parent=43 // pred_check_branch
        %1344 = sbr.rel (%p1342) target = $region48
      $region47: #{end2end_forward.1} parent=43 // pred_region
        %s1345 = smul.u32 2, %s16
        %p1346 = scmp.lt.s32.totalorder %s1345, 3
        %s1347 = scalar_select %p1346, %s1345, 3
        %s1348 = smul.addr %s1347, 2
        %s1349 = smul.addr %s1348, 4
        %s1350 = scalar_lea.vmem %s4, %s1349
      $region48: #{end2end_forward.1} parent=43 // pred_fallthru
        _
    $region44: #{end2end_forward.1} parent=5 // pred_fallthru
      _
  $region6: #{end2end_forward.1} parent=0 // loop_footer
    %s14 = sadd.s32 1, %s10
  $region7: #{end2end_forward.1} parent=0 // loop_footer_branch
    %9 = sbr.rel target = $region3
  $region8: #{end2end_forward.1} parent=0 // loop_exit
    _

</llo_original>
